<compile_context>
chip_gen: v7x
topology: tpu7x:2x2x1
jax: 0.10.0
libtpu: 0.0.40
codegen_flags: <defaults>
</compile_context>

<pallas_src>
import functools

import jax
import jax.numpy as jnp
from jax.experimental import pallas as pl
from jax.experimental.pallas import tpu as pltpu

GN_EPS = 1e-5


def _round_up(v, m):
    return (v + m - 1) // m * m


def _sep_conv_kernel(p1_ref, w1_ref, w2_ref, b2_ref, g_ref, bt_ref, agg_ref,
                     o_ref, zpad_ref, *, inv_cnt, w1p, m1p):
    # p1_ref  : (1, M1p, 3*Cin+1)  conv1 im2col patches (+ ones-column for bias)
    # w1_ref  : (3*Cin+1, Cpad)    conv1 weights + bias row, lane-padded
    # w2_ref  : (3, Cpad, Cpad)    conv2 per-tap weights [kh, ci, co]
    # b2/g/bt : (1, Cpad)          conv2 bias / GN affine (zero on pad lanes)
    # agg_ref : (Cpad, Cpad)       block-diagonal group aggregation (hoisted)
    # o_ref   : (1, M1p, Cpad)     lane-dense output (interior conv2 columns)
    # zpad_ref: (M1p+2*W1p, Cpad)  VMEM: H-halo padded activation (flat rows)
    Cpad = w1_ref.shape[1]
    f32 = jnp.float32

    # ---- conv1 (1,3) VALID: one fused im2col matmul.  Bias rides in the
    #      trailing ones-column, so pad rows / pad lanes of y are exactly 0.
    y = jnp.dot(p1_ref[0], w1_ref[...], preferred_element_type=f32)      # (M1p, Cpad)

    # ---- GroupNorm (per-sample) — fused single-pass statistics ---------------
    # Stack s1/s2 into one (8, Cpad) operand -> a single MXU push against the
    # hoisted block-diagonal aggregation matrix (identity when cg == 1).
    s1 = jnp.sum(y, axis=0, keepdims=True)                               # (1, Cpad)
    s2 = jnp.sum(y * y, axis=0, keepdims=True)                           # (1, Cpad)
    s = jnp.concatenate([s1, s2, jnp.zeros((6, Cpad), f32)], axis=0)     # (8, Cpad)
    s = jnp.dot(s, agg_ref[...], preferred_element_type=f32)             # group sums per lane
    mu = s[0:1, :] * inv_cnt
    var = s[1:2, :] * inv_cnt - mu * mu            # biased variance (matches GN)
    scale = jax.lax.rsqrt(var + GN_EPS) * g_ref[...]   # gamma == 0 on pad lanes
    z = (y - mu) * scale + bt_ref[...]

    # ---- SiLU ----------------------------------------------------------------
    z = z * jax.nn.sigmoid(z)                      # (M1p, Cpad); pad lanes stay 0

    # ---- conv2 (3,1), padding=1 along H: three accumulating matmuls on
    #      sublane-aligned row-shifted windows of the halo-padded activation.
    # Halo rows are re-zeroed each step (cheap) because scratch is per-core.
    zpad_ref[0:w1p, :] = jnp.zeros((w1p, Cpad), f32)
    zpad_ref[w1p + m1p:2 * w1p + m1p, :] = jnp.zeros((w1p, Cpad), f32)
    zpad_ref[w1p:w1p + m1p, :] = z

    y2 = jnp.dot(z, w2_ref[1], preferred_element_type=f32)                        # kh=1 (center)
    y2 += jnp.dot(zpad_ref[0:m1p, :], w2_ref[0], preferred_element_type=f32)      # kh=0 (h-1)
    y2 += jnp.dot(zpad_ref[2 * w1p:2 * w1p + m1p, :], w2_ref[2],
                  preferred_element_type=f32)                                     # kh=2 (h+1)

    # ---- lane-dense store (Cpad multiple of 128, M1p multiple of 8) ----------
    o_ref[0] = y2 + b2_ref[...]


def separated_conv2d_block(x_nchw, w1, b1, w2, b2, gamma, beta, *, num_groups=32):
    """Forward of `separated_conv2D_block` with PyTorch layouts (NCHW / OIHW)."""
    N, Cin, H, W = x_nchw.shape
    Cout = w1.shape[0]
    assert Cout % num_groups == 0, "GroupNorm needs Cout % num_groups == 0"
    assert W >= 3, "conv1 kernel (1,3) with no padding needs W >= 3"
    assert w1.shape == (Cout, Cin, 1, 3) and w2.shape == (Cout, Cout, 3, 1)

    W1 = W - 2                                   # width after conv1 (VALID along W)
    W1p = _round_up(W1, 8)                       # sublane-aligned flattened row stride
    M1 = H * W1                                  # real conv1-output positions / sample
    M1p = H * W1p
    Cpad = _round_up(Cout, 128)                  # lane-dense channel count
    cg = Cout // num_groups
    K1 = 3 * Cin + 1                             # im2col width + ones-column (bias)

    f32 = jnp.float32
    x = jnp.transpose(x_nchw, (0, 2, 3, 1)).astype(f32)                  # NHWC

    # conv1 im2col patches, row-stride padded to W1p.  Pad rows are all-zero
    # (including the ones-column) so the conv1 output there is exactly zero and
    # never pollutes the GroupNorm statistics.
    # TODO(synk): for Cin >= ~32, feed the raw NHWC block and do conv1 as three
    # accumulating dots on W-shifted views instead of a 3x-sized im2col in HBM.
    p1 = jnp.concatenate(
        [x[:, :, 0:W1, :], x[:, :, 1:W1 + 1, :], x[:, :, 2:W1 + 2, :],
         jnp.ones((N, H, W1, 1), f32)], axis=-1)                         # (N,H,W1,K1)
    p1 = jnp.pad(p1, ((0, 0), (0, 0), (0, W1p - W1), (0, 0)))
    p1 = p1.reshape(N, M1p, K1)

    # conv1 weights as an im2col matrix, rows ordered (dw, ci) then the bias row;
    # channel lanes zero-padded to Cpad (keeps pad lanes of y exactly zero).
    w1m = jnp.transpose(w1, (2, 3, 1, 0)).reshape(3 * Cin, Cout).astype(f32)
    w1m = jnp.concatenate([w1m, b1.reshape(1, Cout).astype(f32)], axis=0)
    w1m = jnp.pad(w1m, ((0, 0), (0, Cpad - Cout)))                       # (K1, Cpad)

    # conv2 per-tap (Cpad, Cpad) matrices: w2t[kh, ci, co].
    w2t = jnp.transpose(w2, (2, 3, 1, 0)).reshape(3, Cout, Cout).astype(f32)
    w2t = jnp.pad(w2t, ((0, 0), (0, Cpad - Cout), (0, Cpad - Cout)))     # (3,Cpad,Cpad)

    def cpadded(v):                               # (Cout,) -> (1, Cpad), zero pad
        return jnp.pad(v.astype(f32), (0, Cpad - Cout)).reshape(1, Cpad)

    # Block-diagonal group-aggregation matrix (identity when cg == 1), built once
    # here instead of being re-materialized on the VPU every grid step.
    ch = jnp.arange(Cpad)
    agg = (ch[:, None] // cg == ch[None, :] // cg).astype(f32)           # (Cpad,Cpad)

    # TODO(synk): bf16 matmul operands (weights here, z in-kernel) if a looser
    # tolerance is acceptable.
    kern = functools.partial(_sep_conv_kernel, inv_cnt=1.0 / float(M1 * cg),
                             w1p=W1p, m1p=M1p)

    # VMEM budget: double-buffered blocks + scratch + a few activation temps,
    # clamped to [32 MiB, 48 MiB] (headroom on v7x's 64 MiB physical VMEM).
    block_bytes = 4 * (M1p * K1 + K1 * Cpad + 3 * Cpad * Cpad + 4 * Cpad
                       + Cpad * Cpad + M1p * Cpad)
    scratch_bytes = 4 * (M1p + 2 * W1p) * Cpad
    vmem_limit = int(min(max(2 * (2 * block_bytes + scratch_bytes
                                  + 3 * 4 * M1p * Cpad),
                             32 * 1024 * 1024),
                         48 * 1024 * 1024))

    out_flat = pl.pallas_call(
        kern,
        out_shape=jax.ShapeDtypeStruct((N, M1p, Cpad), f32),
        grid=(N,),
        in_specs=[
            pl.BlockSpec((1, M1p, K1), lambda n: (n, 0, 0)),
            pl.BlockSpec((K1, Cpad), lambda n: (0, 0)),
            pl.BlockSpec((3, Cpad, Cpad), lambda n: (0, 0, 0)),
            pl.BlockSpec((1, Cpad), lambda n: (0, 0)),
            pl.BlockSpec((1, Cpad), lambda n: (0, 0)),
            pl.BlockSpec((1, Cpad), lambda n: (0, 0)),
            pl.BlockSpec((Cpad, Cpad), lambda n: (0, 0)),
        ],
        out_specs=pl.BlockSpec((1, M1p, Cpad), lambda n: (n, 0, 0)),
        scratch_shapes=[pltpu.VMEM((M1p + 2 * W1p, Cpad), f32)],
        compiler_params=pltpu.CompilerParams(
            dimension_semantics=("parallel",),       # GN is per-sample
            vmem_limit_bytes=vmem_limit),
    )(p1, w1m, w2t, cpadded(b2), cpadded(gamma), cpadded(beta), agg)

    # conv2 pads W by 1 with kernel width 1, so the first/last output columns
    # only ever see zero padding: they are exactly the conv2 bias.
    # TODO(synk): fold the border columns / final layout into the kernel output
    # to save this extra HBM pass at memory-bound sizes.
    interior = out_flat.reshape(N, H, W1p, Cpad)[:, :, :W1, :Cout]
    bcol = jnp.broadcast_to(b2.astype(f32).reshape(1, 1, 1, Cout), (N, H, 1, Cout))
    out_nhwc = jnp.concatenate([bcol, interior, bcol], axis=2)           # (N,H,W,Cout)
    return jnp.transpose(out_nhwc, (0, 3, 1, 2))                         # NCHW


def _reference(x_nchw, w1, b1, w2, b2, gamma, beta, num_groups=32):
    """Pure-JAX mirror of the PyTorch module (verification only)."""
    def conv(x, w, b, padding):
        y = jax.lax.conv_general_dilated(
            x, w, window_strides=(1, 1), padding=padding,
            dimension_numbers=('NCHW', 'OIHW', 'NCHW'))
        return y + b.reshape(1, -1, 1, 1)

    def group_norm(t):
        n, c, h, w = t.shape
        g = t.reshape(n, num_groups, c // num_groups, h, w)
        mu = jnp.mean(g, axis=(2, 3, 4), keepdims=True)
        var = jnp.mean((g - mu) ** 2, axis=(2, 3, 4), keepdims=True)
        g = (g - mu) / jnp.sqrt(var + GN_EPS)
        return g.reshape(n, c, h, w) * gamma.reshape(1, -1, 1, 1) \
            + beta.reshape(1, -1, 1, 1)

    y = conv(x_nchw, w1, b1, 'VALID')              # (1,3), padding=0
    y = group_norm(y)
    y = y * jax.nn.sigmoid(y)                      # SiLU
    y = conv(y, w2, b2, ((1, 1), (1, 1)))          # (3,1), padding=1
    return y


if __name__ == "__main__":
    # GroupNorm(32, C) requires C % 32 == 0 -> smallest valid out_channels is 32.
    N, Cin, Cout, H, W = 2, 4, 32, 16, 16

    key = jax.random.PRNGKey(0)
    kx, kw1, kb1, kw2, kb2 = jax.random.split(key, 5)

    x = jax.random.normal(kx, (N, Cin, H, W), jnp.float32)

    # Conv2d default init: U(-1/sqrt(fan_in), +1/sqrt(fan_in)).
    bound1 = 1.0 / (Cin * 1 * 3) ** 0.5
    w1 = jax.random.uniform(kw1, (Cout, Cin, 1, 3), jnp.float32, -bound1, bound1)
    b1 = jax.random.uniform(kb1, (Cout,), jnp.float32, -bound1, bound1)
    bound2 = 1.0 / (Cout * 3 * 1) ** 0.5
    w2 = jax.random.uniform(kw2, (Cout, Cout, 3, 1), jnp.float32, -bound2, bound2)
    b2 = jax.random.uniform(kb2, (Cout,), jnp.float32, -bound2, bound2)
    gamma = jnp.ones((Cout,), jnp.float32)         # GroupNorm default weight
    beta = jnp.zeros((Cout,), jnp.float32)         # GroupNorm default bias

    out = separated_conv2d_block(x, w1, b1, w2, b2, gamma, beta, num_groups=32)
    out = jax.block_until_ready(out)

    ref = _reference(x, w1, b1, w2, b2, gamma, beta, num_groups=32)
    assert out.shape == (N, Cout, H, W), out.shape
    max_err = jnp.max(jnp.abs(out - ref))
    assert jnp.allclose(out, ref, rtol=1e-4, atol=1e-4), \
        f"mismatch vs reference, max abs err = {max_err}"

    print("KERNEL_OK")
</pallas_src>

<mosaic_0001>
module attributes {stable_mosaic.version = 11 : i64} {
  func.func @_sep_conv_kernel(%arg0: i32, %arg1: memref<1x256x13xf32, #tpu.memory_space<vmem>>, %arg2: memref<13x128xf32, #tpu.memory_space<vmem>>, %arg3: memref<3x128x128xf32, #tpu.memory_space<vmem>>, %arg4: memref<1x128xf32, #tpu.memory_space<vmem>>, %arg5: memref<1x128xf32, #tpu.memory_space<vmem>>, %arg6: memref<1x128xf32, #tpu.memory_space<vmem>>, %arg7: memref<128x128xf32, #tpu.memory_space<vmem>>, %arg8: memref<1x256x128xf32, #tpu.memory_space<vmem>>, %arg9: memref<288x128xf32, #tpu.memory_space<vmem>>) attributes {dimension_semantics = [#tpu.dimension_semantics<parallel>], iteration_bounds = array<i64: 2>, scalar_prefetch = 0 : i64, scratch_operands = 1 : i64, tpu.core_type = #tpu.core_type<tc>, window_params = [{transform_indices = @transform_0, window_bounds = array<i64: 1, 256, 13>}, {pipeline_mode = #tpu.pipeline_mode<synchronous>, transform_indices = @transform_1, window_bounds = array<i64: 13, 128>}, {pipeline_mode = #tpu.pipeline_mode<synchronous>, transform_indices = @transform_2, window_bounds = array<i64: 3, 128, 128>}, {pipeline_mode = #tpu.pipeline_mode<synchronous>, transform_indices = @transform_3, window_bounds = array<i64: 1, 128>}, {pipeline_mode = #tpu.pipeline_mode<synchronous>, transform_indices = @transform_4, window_bounds = array<i64: 1, 128>}, {pipeline_mode = #tpu.pipeline_mode<synchronous>, transform_indices = @transform_5, window_bounds = array<i64: 1, 128>}, {pipeline_mode = #tpu.pipeline_mode<synchronous>, transform_indices = @transform_6, window_bounds = array<i64: 128, 128>}, {transform_indices = @transform_7, window_bounds = array<i64: 1, 256, 128>}]} {
    %c0 = arith.constant 0 : index
    %c0_0 = arith.constant 0 : index
    %c0_1 = arith.constant 0 : index
    %0 = vector.load %arg1[%c0, %c0_0, %c0_1] : memref<1x256x13xf32, #tpu.memory_space<vmem>>, vector<1x256x13xf32>
    %1 = vector.shape_cast %0 : vector<1x256x13xf32> to vector<256x13xf32>
    %c0_2 = arith.constant 0 : index
    %c0_3 = arith.constant 0 : index
    %2 = vector.load %arg2[%c0_2, %c0_3] : memref<13x128xf32, #tpu.memory_space<vmem>>, vector<13x128xf32>
    %cst = arith.constant dense<0.000000e+00> : vector<256x128xf32>
    %3 = tpu.matmul %1, %2, %cst {dimension_numbers = #tpu.dot_dimension_numbers<[1], [0], [0], [1], [0, 0, 1, 1], [], []>} : vector<256x13xf32>, vector<13x128xf32>, vector<256x128xf32> -> vector<256x128xf32>
    %cst_4 = arith.constant dense<0.000000e+00> : vector<128xf32>
    %4 = vector.multi_reduction <add>, %3, %cst_4 [0] : vector<256x128xf32> to vector<128xf32>
    %5 = vector.shape_cast %4 : vector<128xf32> to vector<1x128xf32>
    %6 = arith.mulf %3, %3 : vector<256x128xf32>
    %cst_5 = arith.constant dense<0.000000e+00> : vector<128xf32>
    %7 = vector.multi_reduction <add>, %6, %cst_5 [0] : vector<256x128xf32> to vector<128xf32>
    %8 = vector.shape_cast %7 : vector<128xf32> to vector<1x128xf32>
    %cst_6 = arith.constant 0.000000e+00 : f32
    %9 = vector.broadcast %cst_6 : f32 to vector<6x128xf32>
    %10 = tpu.concatenate %5, %8, %9 in 0 : vector<1x128xf32>, vector<1x128xf32>, vector<6x128xf32> -> vector<8x128xf32>
    %c0_7 = arith.constant 0 : index
    %c0_8 = arith.constant 0 : index
    %11 = vector.load %arg7[%c0_7, %c0_8] : memref<128x128xf32, #tpu.memory_space<vmem>>, vector<128x128xf32>
    %cst_9 = arith.constant dense<0.000000e+00> : vector<8x128xf32>
    %12 = tpu.matmul %10, %11, %cst_9 {dimension_numbers = #tpu.dot_dimension_numbers<[1], [0], [0], [1], [0, 0, 1, 1], [], []>} : vector<8x128xf32>, vector<128x128xf32>, vector<8x128xf32> -> vector<8x128xf32>
    %13 = vector.extract_strided_slice %12 {offsets = [0, 0], sizes = [1, 128], strides = [1, 1]} : vector<8x128xf32> to vector<1x128xf32>
    %cst_10 = arith.constant 0.00446428591 : f32
    %14 = vector.broadcast %cst_10 : f32 to vector<1x128xf32>
    %15 = arith.mulf %13, %14 : vector<1x128xf32>
    %16 = vector.extract_strided_slice %12 {offsets = [1, 0], sizes = [1, 128], strides = [1, 1]} : vector<8x128xf32> to vector<1x128xf32>
    %cst_11 = arith.constant 0.00446428591 : f32
    %17 = vector.broadcast %cst_11 : f32 to vector<1x128xf32>
    %18 = arith.mulf %16, %17 : vector<1x128xf32>
    %19 = arith.mulf %15, %15 : vector<1x128xf32>
    %20 = arith.subf %18, %19 : vector<1x128xf32>
    %cst_12 = arith.constant 9.99999974E-6 : f32
    %21 = vector.broadcast %cst_12 : f32 to vector<1x128xf32>
    %22 = arith.addf %20, %21 : vector<1x128xf32>
    %23 = math.rsqrt %22 : vector<1x128xf32>
    %c0_13 = arith.constant 0 : index
    %c0_14 = arith.constant 0 : index
    %24 = vector.load %arg5[%c0_13, %c0_14] : memref<1x128xf32, #tpu.memory_space<vmem>>, vector<1x128xf32>
    %25 = arith.mulf %23, %24 : vector<1x128xf32>
    %26 = vector.broadcast %15 : vector<1x128xf32> to vector<256x128xf32>
    %27 = arith.subf %3, %26 : vector<256x128xf32>
    %28 = vector.broadcast %25 : vector<1x128xf32> to vector<256x128xf32>
    %29 = arith.mulf %27, %28 : vector<256x128xf32>
    %c0_15 = arith.constant 0 : index
    %c0_16 = arith.constant 0 : index
    %30 = vector.load %arg6[%c0_15, %c0_16] : memref<1x128xf32, #tpu.memory_space<vmem>>, vector<1x128xf32>
    %31 = vector.broadcast %30 : vector<1x128xf32> to vector<256x128xf32>
    %32 = arith.addf %29, %31 : vector<256x128xf32>
    %33 = arith.negf %32 : vector<256x128xf32>
    %34 = math.exp %33 : vector<256x128xf32>
    %cst_17 = arith.constant 1.000000e+00 : f32
    %35 = vector.broadcast %cst_17 : f32 to vector<256x128xf32>
    %36 = arith.addf %35, %34 : vector<256x128xf32>
    %37 = arith.divf %35, %36 : vector<256x128xf32>
    %38 = arith.mulf %32, %37 : vector<256x128xf32>
    %cst_18 = arith.constant 0.000000e+00 : f32
    %39 = vector.broadcast %cst_18 : f32 to vector<16x128xf32>
    %c0_19 = arith.constant 0 : index
    %c0_20 = arith.constant 0 : index
    %40 = vector.load %arg9[%c0_19, %c0_20] : memref<288x128xf32, #tpu.memory_space<vmem>>, vector<16x128xf32>
    tpu.vector_store %arg9[%c0_19, %c0_20], %39 {strides = array<i32>} : memref<288x128xf32, #tpu.memory_space<vmem>>, vector<16x128xf32>,
    %cst_21 = arith.constant 0.000000e+00 : f32
    %41 = vector.broadcast %cst_21 : f32 to vector<16x128xf32>
    %c272 = arith.constant 272 : index
    %c0_22 = arith.constant 0 : index
    %42 = vector.load %arg9[%c272, %c0_22] : memref<288x128xf32, #tpu.memory_space<vmem>>, vector<16x128xf32>
    tpu.vector_store %arg9[%c272, %c0_22], %41 {strides = array<i32>} : memref<288x128xf32, #tpu.memory_space<vmem>>, vector<16x128xf32>,
    %c16 = arith.constant 16 : index
    %c0_23 = arith.constant 0 : index
    %43 = vector.load %arg9[%c16, %c0_23] : memref<288x128xf32, #tpu.memory_space<vmem>>, vector<256x128xf32>
    tpu.vector_store %arg9[%c16, %c0_23], %38 {strides = array<i32>} : memref<288x128xf32, #tpu.memory_space<vmem>>, vector<256x128xf32>,
    %c1 = arith.constant 1 : index
    %c0_24 = arith.constant 0 : index
    %c0_25 = arith.constant 0 : index
    %44 = vector.load %arg3[%c1, %c0_24, %c0_25] : memref<3x128x128xf32, #tpu.memory_space<vmem>>, vector<1x128x128xf32>
    %45 = vector.shape_cast %44 : vector<1x128x128xf32> to vector<128x128xf32>
    %cst_26 = arith.constant dense<0.000000e+00> : vector<256x128xf32>
    %46 = tpu.matmul %38, %45, %cst_26 {dimension_numbers = #tpu.dot_dimension_numbers<[1], [0], [0], [1], [0, 0, 1, 1], [], []>} : vector<256x128xf32>, vector<128x128xf32>, vector<256x128xf32> -> vector<256x128xf32>
    %c0_27 = arith.constant 0 : index
    %c0_28 = arith.constant 0 : index
    %47 = vector.load %arg9[%c0_27, %c0_28] : memref<288x128xf32, #tpu.memory_space<vmem>>, vector<256x128xf32>
    %c0_29 = arith.constant 0 : index
    %c0_30 = arith.constant 0 : index
    %c0_31 = arith.constant 0 : index
    %48 = vector.load %arg3[%c0_29, %c0_30, %c0_31] : memref<3x128x128xf32, #tpu.memory_space<vmem>>, vector<1x128x128xf32>
    %49 = vector.shape_cast %48 : vector<1x128x128xf32> to vector<128x128xf32>
    %cst_32 = arith.constant dense<0.000000e+00> : vector<256x128xf32>
    %50 = tpu.matmul %47, %49, %cst_32 {dimension_numbers = #tpu.dot_dimension_numbers<[1], [0], [0], [1], [0, 0, 1, 1], [], []>} : vector<256x128xf32>, vector<128x128xf32>, vector<256x128xf32> -> vector<256x128xf32>
    %51 = arith.addf %46, %50 : vector<256x128xf32>
    %c32 = arith.constant 32 : index
    %c0_33 = arith.constant 0 : index
    %52 = vector.load %arg9[%c32, %c0_33] : memref<288x128xf32, #tpu.memory_space<vmem>>, vector<256x128xf32>
    %c2 = arith.constant 2 : index
    %c0_34 = arith.constant 0 : index
    %c0_35 = arith.constant 0 : index
    %53 = vector.load %arg3[%c2, %c0_34, %c0_35] : memref<3x128x128xf32, #tpu.memory_space<vmem>>, vector<1x128x128xf32>
    %54 = vector.shape_cast %53 : vector<1x128x128xf32> to vector<128x128xf32>
    %cst_36 = arith.constant dense<0.000000e+00> : vector<256x128xf32>
    %55 = tpu.matmul %52, %54, %cst_36 {dimension_numbers = #tpu.dot_dimension_numbers<[1], [0], [0], [1], [0, 0, 1, 1], [], []>} : vector<256x128xf32>, vector<128x128xf32>, vector<256x128xf32> -> vector<256x128xf32>
    %56 = arith.addf %51, %55 : vector<256x128xf32>
    %c0_37 = arith.constant 0 : index
    %c0_38 = arith.constant 0 : index
    %57 = vector.load %arg4[%c0_37, %c0_38] : memref<1x128xf32, #tpu.memory_space<vmem>>, vector<1x128xf32>
    %58 = vector.broadcast %57 : vector<1x128xf32> to vector<256x128xf32>
    %59 = arith.addf %56, %58 : vector<256x128xf32>
    %c0_39 = arith.constant 0 : index
    %c0_40 = arith.constant 0 : index
    %c0_41 = arith.constant 0 : index
    %60 = vector.load %arg8[%c0_39, %c0_40, %c0_41] : memref<1x256x128xf32, #tpu.memory_space<vmem>>, vector<1x256x128xf32>
    %61 = vector.shape_cast %60 : vector<1x256x128xf32> to vector<256x128xf32>
    %62 = vector.shape_cast %59 : vector<256x128xf32> to vector<1x256x128xf32>
    tpu.vector_store %arg8[%c0_39, %c0_40, %c0_41], %62 {strides = array<i32>} : memref<1x256x128xf32, #tpu.memory_space<vmem>>, vector<1x256x128xf32>,
    return
  }
  func.func @transform_0(%arg0: i32) -> (i32, i32, i32) {
    %c0_i32 = arith.constant 0 : i32
    %c0_i32_0 = arith.constant 0 : i32
    %c0_i32_1 = arith.constant 0 : i32
    return %arg0, %c0_i32, %c0_i32_0 : i32, i32, i32
  }
  func.func @transform_1(%arg0: i32) -> (i32, i32) {
    %c0_i32 = arith.constant 0 : i32
    %c0_i32_0 = arith.constant 0 : i32
    %c0_i32_1 = arith.constant 0 : i32
    return %c0_i32, %c0_i32_0 : i32, i32
  }
  func.func @transform_2(%arg0: i32) -> (i32, i32, i32) {
    %c0_i32 = arith.constant 0 : i32
    %c0_i32_0 = arith.constant 0 : i32
    %c0_i32_1 = arith.constant 0 : i32
    %c0_i32_2 = arith.constant 0 : i32
    return %c0_i32, %c0_i32_0, %c0_i32_1 : i32, i32, i32
  }
  func.func @transform_3(%arg0: i32) -> (i32, i32) {
    %c0_i32 = arith.constant 0 : i32
    %c0_i32_0 = arith.constant 0 : i32
    %c0_i32_1 = arith.constant 0 : i32
    return %c0_i32, %c0_i32_0 : i32, i32
  }
  func.func @transform_4(%arg0: i32) -> (i32, i32) {
    %c0_i32 = arith.constant 0 : i32
    %c0_i32_0 = arith.constant 0 : i32
    %c0_i32_1 = arith.constant 0 : i32
    return %c0_i32, %c0_i32_0 : i32, i32
  }
  func.func @transform_5(%arg0: i32) -> (i32, i32) {
    %c0_i32 = arith.constant 0 : i32
    %c0_i32_0 = arith.constant 0 : i32
    %c0_i32_1 = arith.constant 0 : i32
    return %c0_i32, %c0_i32_0 : i32, i32
  }
  func.func @transform_6(%arg0: i32) -> (i32, i32) {
    %c0_i32 = arith.constant 0 : i32
    %c0_i32_0 = arith.constant 0 : i32
    %c0_i32_1 = arith.constant 0 : i32
    return %c0_i32, %c0_i32_0 : i32, i32
  }
  func.func @transform_7(%arg0: i32) -> (i32, i32, i32) {
    %c0_i32 = arith.constant 0 : i32
    %c0_i32_0 = arith.constant 0 : i32
    %c0_i32_1 = arith.constant 0 : i32
    return %arg0, %c0_i32, %c0_i32_0 : i32, i32, i32
  }
}

</mosaic_0001>

<llo_original>
// kernel: tpu_custom_call.1
$region0: #{tpu_custom_call.1}
  #allocation0 [shape = 'u32[]', space=smem, size = 0x4, offset = 0x4, fixed_abs, tag = 'smem constant byte address 0x4 - core index']
  #allocation1 [shape = 'u32[144,128]{1,0:T(1,128)}', space=vmem, size = 0x12000, scoped, tag = 'internal scratch']
  #allocation2 [shape = 'f32[288,128]{1,0:T(8,128)}', space=vmem, size = 0x24000, scoped, tag = 'scratch operand']
  %s0 = inlined_call_operand.vmem [shape: f32[2,256,13], index: 0, kind: input, shape index: {}]
  %s1 = inlined_call_operand.vmem [shape: f32[13,128], index: 1, kind: input, shape index: {}]
  %s2 = inlined_call_operand.vmem [shape: f32[3,128,128], index: 2, kind: input, shape index: {}]
  %s3 = inlined_call_operand.vmem [shape: f32[1,128], index: 3, kind: input, shape index: {}]
  %s4 = inlined_call_operand.vmem [shape: f32[1,128], index: 4, kind: input, shape index: {}]
  %s5 = inlined_call_operand.vmem [shape: f32[1,128], index: 5, kind: input, shape index: {}]
  %s6 = inlined_call_operand.vmem [shape: f32[128,128], index: 6, kind: input, shape index: {}]
  %s7 = inlined_call_operand.hbm [shape: f32[2,256,128], index: 7, kind: output, shape index: {}]
  %s8 = sld [smem:[#allocation0]]
  $region61: #{tpu_custom_call.1} parent=0
    _
  %s10 = ssub.s32 1, %s8
  %s11 = scalar_select 0, %s10, %s8
  $region1: #{tpu_custom_call.1} parent=0
    #allocation3 [shape = 'u8[262144]{0}', space=vmem, size = 0x40000, scoped, tag = 'output window, operand 0']
    #allocation4 [shape = 's32[2]{0}', space=sflag, size = 0x8, scoped, tag = 'scoped memory for tpu_custom_call.1']
    %12 = vsyncpa [#allocation4], 0
    %s13 = scalar_lea.sflag [#allocation4], 1
    %14 = vsyncpa %s13, 0
    loop: start=0, step=1, limit=4
    $region2: #{tpu_custom_call.1} parent=1 // loop_pre_header
      _
    $region3: #{tpu_custom_call.1} parent=1 // loop_header
      %s16 = sphi 0, %s20
      %p17 = scmp.ge.s32.totalorder %s16, 4
      %s26 = sphi 0, %s28
      %s29 = sphi 0, %s26
      %s30 = sphi 0, %s29
      %s46 = sphi 0, %s30
      %s50 = sphi 0, %s50
      %s52 = sphi 0, %s50
      %s53 = sphi 0, %s52
      %s67 = sphi 0, %s53
      %s71 = sphi 0, %s71
      %s73 = sphi 0, %s71
      %s74 = sphi 0, %s73
      %s88 = sphi 0, %s74
      %s92 = sphi 0, %s92
      %s94 = sphi 0, %s92
      %s95 = sphi 0, %s94
      %s109 = sphi 0, %s95
      %s113 = sphi 0, %s113
      %s115 = sphi 0, %s113
      %s116 = sphi 0, %s115
      %s130 = sphi 0, %s116
      %s134 = sphi 0, %s134
      %s136 = sphi 0, %s134
      %s137 = sphi 0, %s136
      %s151 = sphi 0, %s137
      %s155 = sphi 0, %s155
      %s157 = sphi 0, %s155
      %s158 = sphi 0, %s157
      %s172 = sphi 0, %s158
      %s178 = sphi 0, %s180
      %s181 = sphi 0, %s178
      %s182 = sphi 0, %s181
      %s198 = sphi 0, %s182
    $region4: #{tpu_custom_call.1} parent=1 // loop_header_branch
      %19 = sbr.rel (%p17) target = $region8
    $region5: #{tpu_custom_call.1} parent=1 // loop_body
      %s21 = ssub.s32 %s16, 1
      %s22 = ssub.s32 %s16, 2
      %s23 = sadd.s32 %s16, 1
      %s24 = ssub.s32 %s16, %s23
      %p25 = scmp.eq.s32.totalorder %s24, 0
      %s27 = sadd.s32 %s26, 1
      %s28 = scalar_select %p25, %s26, %s27
      %p31 = pneg %p25
      %p32 = scmp.eq.s32.totalorder %s16, 1
      %p33 = por %p31, %p32
      %p34 = scmp.ne.s32.totalorder %s26, %s29
      %p35 = scmp.eq.s32.totalorder %s16, 0
      %p36 = por %p34, %p35
      %p37 = scmp.ne.s32.totalorder %s26, %s29
      %p38 = scmp.eq.s32.totalorder %s21, 1
      %p39 = por %p37, %p38
      %p40 = scmp.ne.s32.totalorder %s29, %s30
      %p41 = scmp.eq.s32.totalorder %s21, 0
      %p42 = por %p40, %p41
      %p43 = scmp.ne.s32.totalorder %s29, %s30
      %p44 = scmp.eq.s32.totalorder %s22, 1
      %p45 = por %p43, %p44
      %p47 = scmp.ne.s32.totalorder %s30, %s46
      %p48 = scmp.eq.s32.totalorder %s22, 0
      %p49 = por %p47, %p48
      %s51 = sadd.s32 %s50, 1
      %p54 = scmp.eq.s32.totalorder %s16, 1
      %p55 = scmp.ne.s32.totalorder %s50, %s52
      %p56 = scmp.eq.s32.totalorder %s16, 0
      %p57 = por %p55, %p56
      %p58 = scmp.ne.s32.totalorder %s50, %s52
      %p59 = scmp.eq.s32.totalorder %s21, 1
      %p60 = por %p58, %p59
      %p61 = scmp.ne.s32.totalorder %s52, %s53
      %p62 = scmp.eq.s32.totalorder %s21, 0
      %p63 = por %p61, %p62
      %p64 = scmp.ne.s32.totalorder %s52, %s53
      %p65 = scmp.eq.s32.totalorder %s22, 1
      %p66 = por %p64, %p65
      %p68 = scmp.ne.s32.totalorder %s53, %s67
      %p69 = scmp.eq.s32.totalorder %s22, 0
      %p70 = por %p68, %p69
      %s72 = sadd.s32 %s71, 1
      %p75 = scmp.eq.s32.totalorder %s16, 1
      %p76 = scmp.ne.s32.totalorder %s71, %s73
      %p77 = scmp.eq.s32.totalorder %s16, 0
      %p78 = por %p76, %p77
      %p79 = scmp.ne.s32.totalorder %s71, %s73
      %p80 = scmp.eq.s32.totalorder %s21, 1
      %p81 = por %p79, %p80
      %p82 = scmp.ne.s32.totalorder %s73, %s74
      %p83 = scmp.eq.s32.totalorder %s21, 0
      %p84 = por %p82, %p83
      %p85 = scmp.ne.s32.totalorder %s73, %s74
      %p86 = scmp.eq.s32.totalorder %s22, 1
      %p87 = por %p85, %p86
      %p89 = scmp.ne.s32.totalorder %s74, %s88
      %p90 = scmp.eq.s32.totalorder %s22, 0
      %p91 = por %p89, %p90
      %s93 = sadd.s32 %s92, 1
      %p96 = scmp.eq.s32.totalorder %s16, 1
      %p97 = scmp.ne.s32.totalorder %s92, %s94
      %p98 = scmp.eq.s32.totalorder %s16, 0
      %p99 = por %p97, %p98
      %p100 = scmp.ne.s32.totalorder %s92, %s94
      %p101 = scmp.eq.s32.totalorder %s21, 1
      %p102 = por %p100, %p101
      %p103 = scmp.ne.s32.totalorder %s94, %s95
      %p104 = scmp.eq.s32.totalorder %s21, 0
      %p105 = por %p103, %p104
      %p106 = scmp.ne.s32.totalorder %s94, %s95
      %p107 = scmp.eq.s32.totalorder %s22, 1
      %p108 = por %p106, %p107
      %p110 = scmp.ne.s32.totalorder %s95, %s109
      %p111 = scmp.eq.s32.totalorder %s22, 0
      %p112 = por %p110, %p111
      %s114 = sadd.s32 %s113, 1
      %p117 = scmp.eq.s32.totalorder %s16, 1
      %p118 = scmp.ne.s32.totalorder %s113, %s115
      %p119 = scmp.eq.s32.totalorder %s16, 0
      %p120 = por %p118, %p119
      %p121 = scmp.ne.s32.totalorder %s113, %s115
      %p122 = scmp.eq.s32.totalorder %s21, 1
      %p123 = por %p121, %p122
      %p124 = scmp.ne.s32.totalorder %s115, %s116
      %p125 = scmp.eq.s32.totalorder %s21, 0
      %p126 = por %p124, %p125
      %p127 = scmp.ne.s32.totalorder %s115, %s116
      %p128 = scmp.eq.s32.totalorder %s22, 1
      %p129 = por %p127, %p128
      %p131 = scmp.ne.s32.totalorder %s116, %s130
      %p132 = scmp.eq.s32.totalorder %s22, 0
      %p133 = por %p131, %p132
      %s135 = sadd.s32 %s134, 1
      %p138 = scmp.eq.s32.totalorder %s16, 1
      %p139 = scmp.ne.s32.totalorder %s134, %s136
      %p140 = scmp.eq.s32.totalorder %s16, 0
      %p141 = por %p139, %p140
      %p142 = scmp.ne.s32.totalorder %s134, %s136
      %p143 = scmp.eq.s32.totalorder %s21, 1
      %p144 = por %p142, %p143
      %p145 = scmp.ne.s32.totalorder %s136, %s137
      %p146 = scmp.eq.s32.totalorder %s21, 0
      %p147 = por %p145, %p146
      %p148 = scmp.ne.s32.totalorder %s136, %s137
      %p149 = scmp.eq.s32.totalorder %s22, 1
      %p150 = por %p148, %p149
      %p152 = scmp.ne.s32.totalorder %s137, %s151
      %p153 = scmp.eq.s32.totalorder %s22, 0
      %p154 = por %p152, %p153
      %s156 = sadd.s32 %s155, 1
      %p159 = scmp.eq.s32.totalorder %s16, 1
      %p160 = scmp.ne.s32.totalorder %s155, %s157
      %p161 = scmp.eq.s32.totalorder %s16, 0
      %p162 = por %p160, %p161
      %p163 = scmp.ne.s32.totalorder %s155, %s157
      %p164 = scmp.eq.s32.totalorder %s21, 1
      %p165 = por %p163, %p164
      %p166 = scmp.ne.s32.totalorder %s157, %s158
      %p167 = scmp.eq.s32.totalorder %s21, 0
      %p168 = por %p166, %p167
      %p169 = scmp.ne.s32.totalorder %s157, %s158
      %p170 = scmp.eq.s32.totalorder %s22, 1
      %p171 = por %p169, %p170
      %p173 = scmp.ne.s32.totalorder %s158, %s172
      %p174 = scmp.eq.s32.totalorder %s22, 0
      %p175 = por %p173, %p174
      %s176 = ssub.s32 %s16, %s23
      %p177 = scmp.eq.s32.totalorder %s176, 0
      %s179 = sadd.s32 %s178, 1
      %s180 = scalar_select %p177, %s178, %s179
      %p183 = pneg %p177
      %p184 = scmp.eq.s32.totalorder %s16, 1
      %p185 = por %p183, %p184
      %p186 = scmp.ne.s32.totalorder %s178, %s181
      %p187 = scmp.eq.s32.totalorder %s16, 0
      %p188 = por %p186, %p187
      %p189 = scmp.ne.s32.totalorder %s178, %s181
      %p190 = scmp.eq.s32.totalorder %s21, 1
      %p191 = por %p189, %p190
      %p192 = scmp.ne.s32.totalorder %s181, %s182
      %p193 = scmp.eq.s32.totalorder %s21, 0
      %p194 = por %p192, %p193
      %p195 = scmp.ne.s32.totalorder %s181, %s182
      %p196 = scmp.eq.s32.totalorder %s22, 1
      %p197 = por %p195, %p196
      %p199 = scmp.ne.s32.totalorder %s182, %s198
      %p200 = scmp.eq.s32.totalorder %s22, 0
      %p201 = por %p199, %p200
      %p202 = scmp.le.s32.totalorder 1, %s16
      %p203 = scmp.lt.s32.totalorder %s16, 3
      %p204 = pnand %p202, %p203
      %p205 = pneg %p204
      // Predicated region
      $region9: #{tpu_custom_call.1} parent=5 // pred_check
        _
      $region10: #{tpu_custom_call.1} parent=5 // pred_check_branch
        %207 = sbr.rel (%p204) target = $region12
      $region11: #{tpu_custom_call.1} parent=5 // pred_region
        %s208 = ssub.s32 %s16, 1
        // Predicated region
        $region13: #{tpu_custom_call.1} parent=11 // pred_check
          %p209 = pneg %p63
        $region14: #{tpu_custom_call.1} parent=11 // pred_check_branch
          %211 = sbr.rel (%p209) target = $region16
        $region15: #{tpu_custom_call.1} parent=11 // pred_region
          _
        $region16: #{tpu_custom_call.1} parent=11 // pred_fallthru
          _
        // Predicated region
        $region17: #{tpu_custom_call.1} parent=11 // pred_check
          %p212 = pneg %p84
        $region18: #{tpu_custom_call.1} parent=11 // pred_check_branch
          %214 = sbr.rel (%p212) target = $region20
        $region19: #{tpu_custom_call.1} parent=11 // pred_region
          _
        $region20: #{tpu_custom_call.1} parent=11 // pred_fallthru
          _
        // Predicated region
        $region21: #{tpu_custom_call.1} parent=11 // pred_check
          %p215 = pneg %p105
        $region22: #{tpu_custom_call.1} parent=11 // pred_check_branch
          %217 = sbr.rel (%p215) target = $region24
        $region23: #{tpu_custom_call.1} parent=11 // pred_region
          _
        $region24: #{tpu_custom_call.1} parent=11 // pred_fallthru
          _
        // Predicated region
        $region25: #{tpu_custom_call.1} parent=11 // pred_check
          %p218 = pneg %p126
        $region26: #{tpu_custom_call.1} parent=11 // pred_check_branch
          %220 = sbr.rel (%p218) target = $region28
        $region27: #{tpu_custom_call.1} parent=11 // pred_region
          _
        $region28: #{tpu_custom_call.1} parent=11 // pred_fallthru
          _
        // Predicated region
        $region29: #{tpu_custom_call.1} parent=11 // pred_check
          %p221 = pneg %p147
        $region30: #{tpu_custom_call.1} parent=11 // pred_check_branch
          %223 = sbr.rel (%p221) target = $region32
        $region31: #{tpu_custom_call.1} parent=11 // pred_region
          _
        $region32: #{tpu_custom_call.1} parent=11 // pred_fallthru
          _
        // Predicated region
        $region33: #{tpu_custom_call.1} parent=11 // pred_check
          %p224 = pneg %p168
        $region34: #{tpu_custom_call.1} parent=11 // pred_check_branch
          %226 = sbr.rel (%p224) target = $region36
        $region35: #{tpu_custom_call.1} parent=11 // pred_region
          _
        $region36: #{tpu_custom_call.1} parent=11 // pred_fallthru
          _
      $region12: #{tpu_custom_call.1} parent=5 // pred_fallthru
        _
      %p227 = scmp.lt.s32.totalorder %s16, 2
      // Predicated region
      $region37: #{tpu_custom_call.1} parent=5 // pred_check
        %p228 = pneg %p227
      $region38: #{tpu_custom_call.1} parent=5 // pred_check_branch
        %230 = sbr.rel (%p228) target = $region40
      $region39: #{tpu_custom_call.1} parent=5 // pred_region
        // Predicated region
        $region41: #{tpu_custom_call.1} parent=39 // pred_check
          %p231 = pneg %p36
        $region42: #{tpu_custom_call.1} parent=39 // pred_check_branch
          %233 = sbr.rel (%p231) target = $region44
        $region43: #{tpu_custom_call.1} parent=39 // pred_region
          %p234 = scmp.lt.s32.totalorder %s16, 1
          %s235 = scalar_select %p234, %s16, 1
          %s236 = smul.addr %s235, 32
          %s237 = smul.addr %s236, 8
          %s238 = scalar_lea.vmem %s0, %s237
        $region44: #{tpu_custom_call.1} parent=39 // pred_fallthru
          _
      $region40: #{tpu_custom_call.1} parent=5 // pred_fallthru
        _
      %p239 = scmp.le.s32.totalorder 1, %s16
      %p240 = scmp.lt.s32.totalorder %s16, 3
      %p241 = pnand %p239, %p240
      %p242 = pneg %p241
      // Predicated region
      $region45: #{tpu_custom_call.1} parent=5 // pred_check
        _
      $region46: #{tpu_custom_call.1} parent=5 // pred_check_branch
        %244 = sbr.rel (%p241) target = $region48
      $region47: #{tpu_custom_call.1} parent=5 // pred_region
        %s245 = ssub.s32 %s16, 1
        %p246 = scmp.lt.s32.totalorder %s21, 1
        %s247 = scalar_select %p246, %s21, 1
        %s248 = smul.addr %s247, 32
        %s249 = smul.addr %s248, 8
        %s250 = scalar_lea.vmem %s0, %s249
        %p251 = pneg %p42
        %p252 = pneg %p39
        %p253 = pneg %p63
        %p254 = pneg %p60
        %p255 = pneg %p84
        %p256 = pneg %p81
        %p257 = pneg %p105
        %p258 = pneg %p102
        %p259 = pneg %p126
        %p260 = pneg %p123
        %p261 = pneg %p147
        %p262 = pneg %p144
        %p263 = pneg %p168
        %p264 = pneg %p165
        %p265 = pneg %p194
        %p266 = pneg %p191
        %s267 = sand.u32 %s181, 1
        %s268 = scalar_lea.sflag [#allocation4], %s267
        %s269 = sand.u32 %s181, 1
        %s270 = smul.addr %s269, 256
        %s271 = scalar_lea.vmem [#allocation3], %s270
        %p272 = scmp.lt.s32.totalorder %s21, 1
        %s273 = scalar_select %p272, %s21, 1
        %s274 = smul.addr %s273, 32
        %s275 = smul.addr %s274, 8
        %s276 = scalar_lea.vmem %s0, %s275
        %v277 = vld [vmem:[%s276] sm:$0xff]
        %v278 = vld [vmem:[%s276 + $0x8] sm:$0xff]
        %v279 = vld [vmem:[%s276 + $0x10] sm:$0xff]
        %v280 = vld [vmem:[%s276 + $0x18] sm:$0xff]
        %v281 = vld [vmem:[%s276 + $0x20] sm:$0xff]
        %v282 = vld [vmem:[%s276 + $0x28] sm:$0xff]
        %v283 = vld [vmem:[%s276 + $0x30] sm:$0xff]
        %v284 = vld [vmem:[%s276 + $0x38] sm:$0xff]
        %v285 = vld [vmem:[%s276 + $0x40] sm:$0xff]
        %v286 = vld [vmem:[%s276 + $0x48] sm:$0xff]
        %v287 = vld [vmem:[%s276 + $0x50] sm:$0xff]
        %v288 = vld [vmem:[%s276 + $0x58] sm:$0xff]
        %v289 = vld [vmem:[%s276 + $0x60] sm:$0xff]
        %v290 = vld [vmem:[%s276 + $0x68] sm:$0xff]
        %v291 = vld [vmem:[%s276 + $0x70] sm:$0xff]
        %v292 = vld [vmem:[%s276 + $0x78] sm:$0xff]
        %v293 = vld [vmem:[%s276 + $0x80] sm:$0xff]
        %v294 = vld [vmem:[%s276 + $0x88] sm:$0xff]
        %v295 = vld [vmem:[%s276 + $0x90] sm:$0xff]
        %v296 = vld [vmem:[%s276 + $0x98] sm:$0xff]
        %v297 = vld [vmem:[%s276 + $0xa0] sm:$0xff]
        %v298 = vld [vmem:[%s276 + $0xa8] sm:$0xff]
        %v299 = vld [vmem:[%s276 + $0xb0] sm:$0xff]
        %v300 = vld [vmem:[%s276 + $0xb8] sm:$0xff]
        %v301 = vld [vmem:[%s276 + $0xc0] sm:$0xff]
        %v302 = vld [vmem:[%s276 + $0xc8] sm:$0xff]
        %v303 = vld [vmem:[%s276 + $0xd0] sm:$0xff]
        %v304 = vld [vmem:[%s276 + $0xd8] sm:$0xff]
        %v305 = vld [vmem:[%s276 + $0xe0] sm:$0xff]
        %v306 = vld [vmem:[%s276 + $0xe8] sm:$0xff]
        %v307 = vld [vmem:[%s276 + $0xf0] sm:$0xff]
        %v308 = vld [vmem:[%s276 + $0xf8] sm:$0xff]
        %v309 = vld [vmem:[%s1] sm:$0xff]
        %v310 = vld [vmem:[%s1 + $0x8] sm:$0x1f]
        %vm311 = vcmask 105472
        %v313 = vsel %vm311, %v277, 0
        %v316 = vsel %vm311, %v278, 0
        %v319 = vsel %vm311, %v279, 0
        %v322 = vsel %vm311, %v280, 0
        %v325 = vsel %vm311, %v281, 0
        %v328 = vsel %vm311, %v282, 0
        %v331 = vsel %vm311, %v283, 0
        %v334 = vsel %vm311, %v284, 0
        %v337 = vsel %vm311, %v285, 0
        %v340 = vsel %vm311, %v286, 0
        %v343 = vsel %vm311, %v287, 0
        %v346 = vsel %vm311, %v288, 0
        %v349 = vsel %vm311, %v289, 0
        %v352 = vsel %vm311, %v290, 0
        %v355 = vsel %vm311, %v291, 0
        %v358 = vsel %vm311, %v292, 0
        %v361 = vsel %vm311, %v293, 0
        %v364 = vsel %vm311, %v294, 0
        %v367 = vsel %vm311, %v295, 0
        %v370 = vsel %vm311, %v296, 0
        %v373 = vsel %vm311, %v297, 0
        %v376 = vsel %vm311, %v298, 0
        %v379 = vsel %vm311, %v299, 0
        %v382 = vsel %vm311, %v300, 0
        %v385 = vsel %vm311, %v301, 0
        %v388 = vsel %vm311, %v302, 0
        %v391 = vsel %vm311, %v303, 0
        %v394 = vsel %vm311, %v304, 0
        %v397 = vsel %vm311, %v305, 0
        %v400 = vsel %vm311, %v306, 0
        %v403 = vsel %vm311, %v307, 0
        %v406 = vsel %vm311, %v308, 0
        %vm408 = vcmask 1044480
        %v410 = vsel %vm408, %v310, 0
        %412 = vmatprep.subr.mxu0 0.0
        %413 = vmatpush1.msra.mxu0 %v309
        %414 = vmatprep.subr.mxu0 0.0
        %415 = vmatpush1.msra.mxu0 %v410
        %416 = vmatprep.subr.mxu0 0.0
        %417 = vmatpush1.msra.mxu0 0.0
        %418 = vmatprep.subr.mxu0 0.0
        %419 = vmatpush1.msra.mxu0 0.0
        %420 = vmatprep.subr.mxu0 0.0
        %421 = vmatpush1.msra.mxu0 0.0
        %422 = vmatprep.subr.mxu0 0.0
        %423 = vmatpush1.msra.mxu0 0.0
        %424 = vmatprep.subr.mxu0 0.0
        %425 = vmatpush1.msra.mxu0 0.0
        %426 = vmatprep.subr.mxu0 0.0
        %427 = vmatpush1.msra.mxu0 0.0
        %428 = vmatprep.subr.mxu0 0.0
        %429 = vmatpush1.msra.mxu0 0.0
        %430 = vmatprep.subr.mxu0 0.0
        %431 = vmatpush1.msra.mxu0 0.0
        %432 = vmatprep.subr.mxu0 0.0
        %433 = vmatpush1.msra.mxu0 0.0
        %434 = vmatprep.subr.mxu0 0.0
        %435 = vmatpush1.msra.mxu0 0.0
        %436 = vmatprep.subr.mxu0 0.0
        %437 = vmatpush1.msra.mxu0 0.0
        %438 = vmatprep.subr.mxu0 0.0
        %439 = vmatpush1.msra.mxu0 0.0
        %440 = vmatprep.subr.mxu0 0.0
        %441 = vmatpush1.msra.mxu0 0.0
        %442 = vmatprep.subr.mxu0 0.0
        %443 = vmatpush1.msra.mxu0 0.0
        %444 = vmatprep.subr.mxu0 0.0
        %445 = vmatpush1.msra.mxu0 0.0
        %446 = vmatprep.subr.mxu0 0.0
        %447 = vmatpush1.msra.mxu0 0.0
        %448 = vmatprep.subr.mxu0 0.0
        %449 = vmatpush1.msra.mxu0 0.0
        %450 = vmatprep.subr.mxu0 0.0
        %451 = vmatpush1.msra.mxu0 0.0
        %452 = vmatprep.subr.mxu0 0.0
        %453 = vmatpush1.msra.mxu0 0.0
        %454 = vmatprep.subr.mxu0 0.0
        %455 = vmatpush1.msra.mxu0 0.0
        %456 = vmatprep.subr.mxu0 0.0
        %457 = vmatpush1.msra.mxu0 0.0
        %458 = vmatprep.subr.mxu0 0.0
        %459 = vmatpush1.msra.mxu0 0.0
        %460 = vmatprep.subr.mxu0 0.0
        %461 = vmatpush1.msra.mxu0 0.0
        %462 = vmatprep.subr.mxu0 0.0
        %463 = vmatpush1.msra.mxu0 0.0
        %464 = vmatprep.subr.mxu0 0.0
        %465 = vmatpush1.msra.mxu0 0.0
        %466 = vmatprep.subr.mxu0 0.0
        %467 = vmatpush1.msra.mxu0 0.0
        %468 = vmatprep.subr.mxu0 0.0
        %469 = vmatpush1.msra.mxu0 0.0
        %470 = vmatprep.subr.mxu0 0.0
        %471 = vmatpush1.msra.mxu0 0.0
        %472 = vmatprep.subr.mxu0 0.0
        %473 = vmatpush1.msra.mxu0 0.0
        %474 = vmatprep.subr.mxu0 0.0
        %475 = vmatpush1.msra.mxu0 0.0
        %476 = vmatprep.mubr.f32.mxu0 0.0
        %477 = vmatmul.mubr.f32.gmra.mrb[0].mxu0 %v313
        %v478 = vpop.f32.mrb[0].mxu0
        %v479 = vadd.f32 0.0, %v478
        %v480 = vpop.f32.mrb[0].mxu0
        %481 = vmatprep.mubr.f32.mxu0 0.0
        %482 = vmatmul.mubr.f32.gmra.mrb[0].mxu0 %v316
        %v483 = vpop.f32.mrb[0].mxu0
        %v484 = vadd.f32 0.0, %v483
        %v485 = vpop.f32.mrb[0].mxu0
        %486 = vmatprep.mubr.f32.mxu0 0.0
        %487 = vmatmul.mubr.f32.gmra.mrb[0].mxu0 %v319
        %v488 = vpop.f32.mrb[0].mxu0
        %v489 = vadd.f32 0.0, %v488
        %v490 = vpop.f32.mrb[0].mxu0
        %491 = vmatprep.mubr.f32.mxu0 0.0
        %492 = vmatmul.mubr.f32.gmra.mrb[0].mxu0 %v322
        %v493 = vpop.f32.mrb[0].mxu0
        %v494 = vadd.f32 0.0, %v493
        %v495 = vpop.f32.mrb[0].mxu0
        %496 = vmatprep.mubr.f32.mxu0 0.0
        %497 = vmatmul.mubr.f32.gmra.mrb[0].mxu0 %v325
        %v498 = vpop.f32.mrb[0].mxu0
        %v499 = vadd.f32 0.0, %v498
        %v500 = vpop.f32.mrb[0].mxu0
        %501 = vmatprep.mubr.f32.mxu0 0.0
        %502 = vmatmul.mubr.f32.gmra.mrb[0].mxu0 %v328
        %v503 = vpop.f32.mrb[0].mxu0
        %v504 = vadd.f32 0.0, %v503
        %v505 = vpop.f32.mrb[0].mxu0
        %506 = vmatprep.mubr.f32.mxu0 0.0
        %507 = vmatmul.mubr.f32.gmra.mrb[0].mxu0 %v331
        %v508 = vpop.f32.mrb[0].mxu0
        %v509 = vadd.f32 0.0, %v508
        %v510 = vpop.f32.mrb[0].mxu0
        %511 = vmatprep.mubr.f32.mxu0 0.0
        %512 = vmatmul.mubr.f32.gmra.mrb[0].mxu0 %v334
        %v513 = vpop.f32.mrb[0].mxu0
        %v514 = vadd.f32 0.0, %v513
        %v515 = vpop.f32.mrb[0].mxu0
        %516 = vmatprep.mubr.f32.mxu0 0.0
        %517 = vmatmul.mubr.f32.gmra.mrb[0].mxu0 %v337
        %v518 = vpop.f32.mrb[0].mxu0
        %v519 = vadd.f32 0.0, %v518
        %v520 = vpop.f32.mrb[0].mxu0
        %521 = vmatprep.mubr.f32.mxu0 0.0
        %522 = vmatmul.mubr.f32.gmra.mrb[0].mxu0 %v340
        %v523 = vpop.f32.mrb[0].mxu0
        %v524 = vadd.f32 0.0, %v523
        %v525 = vpop.f32.mrb[0].mxu0
        %526 = vmatprep.mubr.f32.mxu0 0.0
        %527 = vmatmul.mubr.f32.gmra.mrb[0].mxu0 %v343
        %v528 = vpop.f32.mrb[0].mxu0
        %v529 = vadd.f32 0.0, %v528
        %v530 = vpop.f32.mrb[0].mxu0
        %531 = vmatprep.mubr.f32.mxu0 0.0
        %532 = vmatmul.mubr.f32.gmra.mrb[0].mxu0 %v346
        %v533 = vpop.f32.mrb[0].mxu0
        %v534 = vadd.f32 0.0, %v533
        %v535 = vpop.f32.mrb[0].mxu0
        %536 = vmatprep.mubr.f32.mxu0 0.0
        %537 = vmatmul.mubr.f32.gmra.mrb[0].mxu0 %v349
        %v538 = vpop.f32.mrb[0].mxu0
        %v539 = vadd.f32 0.0, %v538
        %v540 = vpop.f32.mrb[0].mxu0
        %541 = vmatprep.mubr.f32.mxu0 0.0
        %542 = vmatmul.mubr.f32.gmra.mrb[0].mxu0 %v352
        %v543 = vpop.f32.mrb[0].mxu0
        %v544 = vadd.f32 0.0, %v543
        %v545 = vpop.f32.mrb[0].mxu0
        %546 = vmatprep.mubr.f32.mxu0 0.0
        %547 = vmatmul.mubr.f32.gmra.mrb[0].mxu0 %v355
        %v548 = vpop.f32.mrb[0].mxu0
        %v549 = vadd.f32 0.0, %v548
        %v550 = vpop.f32.mrb[0].mxu0
        %551 = vmatprep.mubr.f32.mxu0 0.0
        %552 = vmatmul.mubr.f32.gmra.mrb[0].mxu0 %v358
        %v553 = vpop.f32.mrb[0].mxu0
        %v554 = vadd.f32 0.0, %v553
        %v555 = vpop.f32.mrb[0].mxu0
        %556 = vmatprep.mubr.f32.mxu0 0.0
        %557 = vmatmul.mubr.f32.gmra.mrb[0].mxu0 %v361
        %v558 = vpop.f32.mrb[0].mxu0
        %v559 = vadd.f32 0.0, %v558
        %v560 = vpop.f32.mrb[0].mxu0
        %561 = vmatprep.mubr.f32.mxu0 0.0
        %562 = vmatmul.mubr.f32.gmra.mrb[0].mxu0 %v364
        %v563 = vpop.f32.mrb[0].mxu0
        %v564 = vadd.f32 0.0, %v563
        %v565 = vpop.f32.mrb[0].mxu0
        %566 = vmatprep.mubr.f32.mxu0 0.0
        %567 = vmatmul.mubr.f32.gmra.mrb[0].mxu0 %v367
        %v568 = vpop.f32.mrb[0].mxu0
        %v569 = vadd.f32 0.0, %v568
        %v570 = vpop.f32.mrb[0].mxu0
        %571 = vmatprep.mubr.f32.mxu0 0.0
        %572 = vmatmul.mubr.f32.gmra.mrb[0].mxu0 %v370
        %v573 = vpop.f32.mrb[0].mxu0
        %v574 = vadd.f32 0.0, %v573
        %v575 = vpop.f32.mrb[0].mxu0
        %576 = vmatprep.mubr.f32.mxu0 0.0
        %577 = vmatmul.mubr.f32.gmra.mrb[0].mxu0 %v373
        %v578 = vpop.f32.mrb[0].mxu0
        %v579 = vadd.f32 0.0, %v578
        %v580 = vpop.f32.mrb[0].mxu0
        %581 = vmatprep.mubr.f32.mxu0 0.0
        %582 = vmatmul.mubr.f32.gmra.mrb[0].mxu0 %v376
        %v583 = vpop.f32.mrb[0].mxu0
        %v584 = vadd.f32 0.0, %v583
        %v585 = vpop.f32.mrb[0].mxu0
        %586 = vmatprep.mubr.f32.mxu0 0.0
        %587 = vmatmul.mubr.f32.gmra.mrb[0].mxu0 %v379
        %v588 = vpop.f32.mrb[0].mxu0
        %v589 = vadd.f32 0.0, %v588
        %v590 = vpop.f32.mrb[0].mxu0
        %591 = vmatprep.mubr.f32.mxu0 0.0
        %592 = vmatmul.mubr.f32.gmra.mrb[0].mxu0 %v382
        %v593 = vpop.f32.mrb[0].mxu0
        %v594 = vadd.f32 0.0, %v593
        %v595 = vpop.f32.mrb[0].mxu0
        %596 = vmatprep.mubr.f32.mxu0 0.0
        %597 = vmatmul.mubr.f32.gmra.mrb[0].mxu0 %v385
        %v598 = vpop.f32.mrb[0].mxu0
        %v599 = vadd.f32 0.0, %v598
        %v600 = vpop.f32.mrb[0].mxu0
        %601 = vmatprep.mubr.f32.mxu0 0.0
        %602 = vmatmul.mubr.f32.gmra.mrb[0].mxu0 %v388
        %v603 = vpop.f32.mrb[0].mxu0
        %v604 = vadd.f32 0.0, %v603
        %v605 = vpop.f32.mrb[0].mxu0
        %606 = vmatprep.mubr.f32.mxu0 0.0
        %607 = vmatmul.mubr.f32.gmra.mrb[0].mxu0 %v391
        %v608 = vpop.f32.mrb[0].mxu0
        %v609 = vadd.f32 0.0, %v608
        %v610 = vpop.f32.mrb[0].mxu0
        %611 = vmatprep.mubr.f32.mxu0 0.0
        %612 = vmatmul.mubr.f32.gmra.mrb[0].mxu0 %v394
        %v613 = vpop.f32.mrb[0].mxu0
        %v614 = vadd.f32 0.0, %v613
        %v615 = vpop.f32.mrb[0].mxu0
        %616 = vmatprep.mubr.f32.mxu0 0.0
        %617 = vmatmul.mubr.f32.gmra.mrb[0].mxu0 %v397
        %v618 = vpop.f32.mrb[0].mxu0
        %v619 = vadd.f32 0.0, %v618
        %v620 = vpop.f32.mrb[0].mxu0
        %621 = vmatprep.mubr.f32.mxu0 0.0
        %622 = vmatmul.mubr.f32.gmra.mrb[0].mxu0 %v400
        %v623 = vpop.f32.mrb[0].mxu0
        %v624 = vadd.f32 0.0, %v623
        %v625 = vpop.f32.mrb[0].mxu0
        %626 = vmatprep.mubr.f32.mxu0 0.0
        %627 = vmatmul.mubr.f32.gmra.mrb[0].mxu0 %v403
        %v628 = vpop.f32.mrb[0].mxu0
        %v629 = vadd.f32 0.0, %v628
        %v630 = vpop.f32.mrb[0].mxu0
        %631 = vmatprep.mubr.f32.mxu0 0.0
        %632 = vmatmul.mubr.f32.gmra.mrb[0].mxu0 %v406
        %v633 = vpop.f32.mrb[0].mxu0
        %v634 = vadd.f32 0.0, %v633
        %v635 = vpop.f32.mrb[0].mxu0
        %636 = vdwg.mxu0
        %v637 = vadd.f32 %v479, %v484
        %v638 = vadd.f32 %v637, %v489
        %v639 = vadd.f32 %v638, %v494
        %v640 = vadd.f32 %v639, %v499
        %v641 = vadd.f32 %v640, %v504
        %v642 = vadd.f32 %v641, %v509
        %v643 = vadd.f32 %v642, %v514
        %v644 = vadd.f32 %v643, %v519
        %v645 = vadd.f32 %v644, %v524
        %v646 = vadd.f32 %v645, %v529
        %v647 = vadd.f32 %v646, %v534
        %v648 = vadd.f32 %v647, %v539
        %v649 = vadd.f32 %v648, %v544
        %v650 = vadd.f32 %v649, %v549
        %v651 = vadd.f32 %v650, %v554
        %v652 = vadd.f32 %v651, %v559
        %v653 = vadd.f32 %v652, %v564
        %v654 = vadd.f32 %v653, %v569
        %v655 = vadd.f32 %v654, %v574
        %v656 = vadd.f32 %v655, %v579
        %v657 = vadd.f32 %v656, %v584
        %v658 = vadd.f32 %v657, %v589
        %v659 = vadd.f32 %v658, %v594
        %v660 = vadd.f32 %v659, %v599
        %v661 = vadd.f32 %v660, %v604
        %v662 = vadd.f32 %v661, %v609
        %v663 = vadd.f32 %v662, %v614
        %v664 = vadd.f32 %v663, %v619
        %v665 = vadd.f32 %v664, %v624
        %v666 = vadd.f32 %v665, %v629
        %v667 = vadd.f32 %v666, %v634
        %v668 = vrot.slane %v667, 4
        %v669 = vadd.f32 %v667, %v668
        %v670 = vrot.slane %v669, 2
        %v671 = vadd.f32 %v669, %v670
        %v672 = vrot.slane %v671, 1
        %v673 = vadd.f32 %v671, %v672
        %v674 = vmul.f32 %v479, %v479
        %v675 = vmul.f32 %v484, %v484
        %v676 = vmul.f32 %v489, %v489
        %v677 = vmul.f32 %v494, %v494
        %v678 = vmul.f32 %v499, %v499
        %v679 = vmul.f32 %v504, %v504
        %v680 = vmul.f32 %v509, %v509
        %v681 = vmul.f32 %v514, %v514
        %v682 = vmul.f32 %v519, %v519
        %v683 = vmul.f32 %v524, %v524
        %v684 = vmul.f32 %v529, %v529
        %v685 = vmul.f32 %v534, %v534
        %v686 = vmul.f32 %v539, %v539
        %v687 = vmul.f32 %v544, %v544
        %v688 = vmul.f32 %v549, %v549
        %v689 = vmul.f32 %v554, %v554
        %v690 = vmul.f32 %v559, %v559
        %v691 = vmul.f32 %v564, %v564
        %v692 = vmul.f32 %v569, %v569
        %v693 = vmul.f32 %v574, %v574
        %v694 = vmul.f32 %v579, %v579
        %v695 = vmul.f32 %v584, %v584
        %v696 = vmul.f32 %v589, %v589
        %v697 = vmul.f32 %v594, %v594
        %v698 = vmul.f32 %v599, %v599
        %v699 = vmul.f32 %v604, %v604
        %v700 = vmul.f32 %v609, %v609
        %v701 = vmul.f32 %v614, %v614
        %v702 = vmul.f32 %v619, %v619
        %v703 = vmul.f32 %v624, %v624
        %v704 = vmul.f32 %v629, %v629
        %v705 = vmul.f32 %v634, %v634
        %v706 = vadd.f32 %v674, %v675
        %v707 = vadd.f32 %v706, %v676
        %v708 = vadd.f32 %v707, %v677
        %v709 = vadd.f32 %v708, %v678
        %v710 = vadd.f32 %v709, %v679
        %v711 = vadd.f32 %v710, %v680
        %v712 = vadd.f32 %v711, %v681
        %v713 = vadd.f32 %v712, %v682
        %v714 = vadd.f32 %v713, %v683
        %v715 = vadd.f32 %v714, %v684
        %v716 = vadd.f32 %v715, %v685
        %v717 = vadd.f32 %v716, %v686
        %v718 = vadd.f32 %v717, %v687
        %v719 = vadd.f32 %v718, %v688
        %v720 = vadd.f32 %v719, %v689
        %v721 = vadd.f32 %v720, %v690
        %v722 = vadd.f32 %v721, %v691
        %v723 = vadd.f32 %v722, %v692
        %v724 = vadd.f32 %v723, %v693
        %v725 = vadd.f32 %v724, %v694
        %v726 = vadd.f32 %v725, %v695
        %v727 = vadd.f32 %v726, %v696
        %v728 = vadd.f32 %v727, %v697
        %v729 = vadd.f32 %v728, %v698
        %v730 = vadd.f32 %v729, %v699
        %v731 = vadd.f32 %v730, %v700
        %v732 = vadd.f32 %v731, %v701
        %v733 = vadd.f32 %v732, %v702
        %v734 = vadd.f32 %v733, %v703
        %v735 = vadd.f32 %v734, %v704
        %v736 = vadd.f32 %v735, %v705
        %v737 = vrot.slane %v736, 4
        %v738 = vadd.f32 %v736, %v737
        %v739 = vrot.slane %v738, 2
        %v740 = vadd.f32 %v738, %v739
        %v741 = vrot.slane %v740, 1
        %v742 = vadd.f32 %v740, %v741
        %vm743 = vcmask 1040384
        %v744 = vsel %vm743, %v673, %v742
        %vm745 = vcmask 1041408
        %v746 = vsel %vm745, %v744, 0.0
        %v747 = vld [vmem:[%s6] sm:$0xff]
        %v748 = vld [vmem:[%s6 + $0x8] sm:$0xff]
        %v749 = vld [vmem:[%s6 + $0x10] sm:$0xff]
        %v750 = vld [vmem:[%s6 + $0x18] sm:$0xff]
        %v751 = vld [vmem:[%s6 + $0x20] sm:$0xff]
        %v752 = vld [vmem:[%s6 + $0x28] sm:$0xff]
        %v753 = vld [vmem:[%s6 + $0x30] sm:$0xff]
        %v754 = vld [vmem:[%s6 + $0x38] sm:$0xff]
        %v755 = vld [vmem:[%s6 + $0x40] sm:$0xff]
        %v756 = vld [vmem:[%s6 + $0x48] sm:$0xff]
        %v757 = vld [vmem:[%s6 + $0x50] sm:$0xff]
        %v758 = vld [vmem:[%s6 + $0x58] sm:$0xff]
        %v759 = vld [vmem:[%s6 + $0x60] sm:$0xff]
        %v760 = vld [vmem:[%s6 + $0x68] sm:$0xff]
        %v761 = vld [vmem:[%s6 + $0x70] sm:$0xff]
        %v762 = vld [vmem:[%s6 + $0x78] sm:$0xff]
        %763 = vmatprep.subr.mxu0 0.0
        %764 = vmatpush1.msra.mxu0 %v747
        %765 = vmatprep.subr.mxu0 0.0
        %766 = vmatpush1.msra.mxu0 %v748
        %767 = vmatprep.subr.mxu0 0.0
        %768 = vmatpush1.msra.mxu0 %v749
        %769 = vmatprep.subr.mxu0 0.0
        %770 = vmatpush1.msra.mxu0 %v750
        %771 = vmatprep.subr.mxu0 0.0
        %772 = vmatpush1.msra.mxu0 %v751
        %773 = vmatprep.subr.mxu0 0.0
        %774 = vmatpush1.msra.mxu0 %v752
        %775 = vmatprep.subr.mxu0 0.0
        %776 = vmatpush1.msra.mxu0 %v753
        %777 = vmatprep.subr.mxu0 0.0
        %778 = vmatpush1.msra.mxu0 %v754
        %779 = vmatprep.subr.mxu0 0.0
        %780 = vmatpush1.msra.mxu0 %v755
        %781 = vmatprep.subr.mxu0 0.0
        %782 = vmatpush1.msra.mxu0 %v756
        %783 = vmatprep.subr.mxu0 0.0
        %784 = vmatpush1.msra.mxu0 %v757
        %785 = vmatprep.subr.mxu0 0.0
        %786 = vmatpush1.msra.mxu0 %v758
        %787 = vmatprep.subr.mxu0 0.0
        %788 = vmatpush1.msra.mxu0 %v759
        %789 = vmatprep.subr.mxu0 0.0
        %790 = vmatpush1.msra.mxu0 %v760
        %791 = vmatprep.subr.mxu0 0.0
        %792 = vmatpush1.msra.mxu0 %v761
        %793 = vmatprep.subr.mxu0 0.0
        %794 = vmatpush1.msra.mxu0 %v762
        %795 = vmatprep.subr.mxu0 0.0
        %796 = vmatpush1.msra.mxu0 0.0
        %797 = vmatprep.subr.mxu0 0.0
        %798 = vmatpush1.msra.mxu0 0.0
        %799 = vmatprep.subr.mxu0 0.0
        %800 = vmatpush1.msra.mxu0 0.0
        %801 = vmatprep.subr.mxu0 0.0
        %802 = vmatpush1.msra.mxu0 0.0
        %803 = vmatprep.subr.mxu0 0.0
        %804 = vmatpush1.msra.mxu0 0.0
        %805 = vmatprep.subr.mxu0 0.0
        %806 = vmatpush1.msra.mxu0 0.0
        %807 = vmatprep.subr.mxu0 0.0
        %808 = vmatpush1.msra.mxu0 0.0
        %809 = vmatprep.subr.mxu0 0.0
        %810 = vmatpush1.msra.mxu0 0.0
        %811 = vmatprep.subr.mxu0 0.0
        %812 = vmatpush1.msra.mxu0 0.0
        %813 = vmatprep.subr.mxu0 0.0
        %814 = vmatpush1.msra.mxu0 0.0
        %815 = vmatprep.subr.mxu0 0.0
        %816 = vmatpush1.msra.mxu0 0.0
        %817 = vmatprep.subr.mxu0 0.0
        %818 = vmatpush1.msra.mxu0 0.0
        %819 = vmatprep.subr.mxu0 0.0
        %820 = vmatpush1.msra.mxu0 0.0
        %821 = vmatprep.subr.mxu0 0.0
        %822 = vmatpush1.msra.mxu0 0.0
        %823 = vmatprep.subr.mxu0 0.0
        %824 = vmatpush1.msra.mxu0 0.0
        %825 = vmatprep.subr.mxu0 0.0
        %826 = vmatpush1.msra.mxu0 0.0
        %827 = vmatprep.mubr.f32.mxu0 0.0
        %828 = vmatmul.mubr.f32.gmra.mrb[0].mxu0 %v746
        %v829 = vpop.f32.mrb[0].mxu0
        %v830 = vadd.f32 0.0, %v829
        %v831 = vpop.f32.mrb[0].mxu0
        %832 = vdwg.mxu0
        %v833 = vmul.f32 %v830, 0.004464286
        %v834 = vmul.f32 %v833, %v833
        %v836 = vrot.slane %v834, 7
        %v838 = vsub.f32 %v833, %v836
        %v839 = vadd.f32 %v838, 1e-05
        %v840 = vrsqrt.pop %v839
        %v841 = vld [vmem:[%s4] sm:$0x1]
        %v843 = vlaneseq
        %v844 = vshrl.u32 %v843, 7
        %v845 = vsub.s32 0, %v844
        %v846 = vrot.slane %v841, %v845
        %v848 = vmul.f32 %v840, %v846
        %v849 = vlaneseq
        %v850 = vshrl.u32 %v849, 7
        %v851 = vsub.s32 0, %v850
        %v852 = vrot.slane %v833, %v851
        %v853 = vsub.f32 %v479, %v852
        %v854 = vsub.f32 %v484, %v852
        %v855 = vsub.f32 %v489, %v852
        %v856 = vsub.f32 %v494, %v852
        %v857 = vsub.f32 %v499, %v852
        %v858 = vsub.f32 %v504, %v852
        %v859 = vsub.f32 %v509, %v852
        %v860 = vsub.f32 %v514, %v852
        %v861 = vsub.f32 %v519, %v852
        %v862 = vsub.f32 %v524, %v852
        %v863 = vsub.f32 %v529, %v852
        %v864 = vsub.f32 %v534, %v852
        %v865 = vsub.f32 %v539, %v852
        %v866 = vsub.f32 %v544, %v852
        %v867 = vsub.f32 %v549, %v852
        %v868 = vsub.f32 %v554, %v852
        %v869 = vsub.f32 %v559, %v852
        %v870 = vsub.f32 %v564, %v852
        %v871 = vsub.f32 %v569, %v852
        %v872 = vsub.f32 %v574, %v852
        %v873 = vsub.f32 %v579, %v852
        %v874 = vsub.f32 %v584, %v852
        %v875 = vsub.f32 %v589, %v852
        %v876 = vsub.f32 %v594, %v852
        %v877 = vsub.f32 %v599, %v852
        %v878 = vsub.f32 %v604, %v852
        %v879 = vsub.f32 %v609, %v852
        %v880 = vsub.f32 %v614, %v852
        %v881 = vsub.f32 %v619, %v852
        %v882 = vsub.f32 %v624, %v852
        %v883 = vsub.f32 %v629, %v852
        %v884 = vsub.f32 %v634, %v852
        %v885 = vlaneseq
        %v886 = vshrl.u32 %v885, 7
        %v887 = vsub.s32 1, %v886
        %v888 = vrot.slane %v848, %v887
        %v889 = vmul.f32 %v853, %v888
        %v890 = vmul.f32 %v854, %v888
        %v891 = vmul.f32 %v855, %v888
        %v892 = vmul.f32 %v856, %v888
        %v893 = vmul.f32 %v857, %v888
        %v894 = vmul.f32 %v858, %v888
        %v895 = vmul.f32 %v859, %v888
        %v896 = vmul.f32 %v860, %v888
        %v897 = vmul.f32 %v861, %v888
        %v898 = vmul.f32 %v862, %v888
        %v899 = vmul.f32 %v863, %v888
        %v900 = vmul.f32 %v864, %v888
        %v901 = vmul.f32 %v865, %v888
        %v902 = vmul.f32 %v866, %v888
        %v903 = vmul.f32 %v867, %v888
        %v904 = vmul.f32 %v868, %v888
        %v905 = vmul.f32 %v869, %v888
        %v906 = vmul.f32 %v870, %v888
        %v907 = vmul.f32 %v871, %v888
        %v908 = vmul.f32 %v872, %v888
        %v909 = vmul.f32 %v873, %v888
        %v910 = vmul.f32 %v874, %v888
        %v911 = vmul.f32 %v875, %v888
        %v912 = vmul.f32 %v876, %v888
        %v913 = vmul.f32 %v877, %v888
        %v914 = vmul.f32 %v878, %v888
        %v915 = vmul.f32 %v879, %v888
        %v916 = vmul.f32 %v880, %v888
        %v917 = vmul.f32 %v881, %v888
        %v918 = vmul.f32 %v882, %v888
        %v919 = vmul.f32 %v883, %v888
        %v920 = vmul.f32 %v884, %v888
        %v921 = vld [vmem:[%s5] sm:$0x1]
        %v923 = vlaneseq
        %v924 = vshrl.u32 %v923, 7
        %v925 = vsub.s32 0, %v924
        %v926 = vrot.slane %v921, %v925
        %v928 = vadd.f32 %v889, %v926
        %v929 = vadd.f32 %v890, %v926
        %v930 = vadd.f32 %v891, %v926
        %v931 = vadd.f32 %v892, %v926
        %v932 = vadd.f32 %v893, %v926
        %v933 = vadd.f32 %v894, %v926
        %v934 = vadd.f32 %v895, %v926
        %v935 = vadd.f32 %v896, %v926
        %v936 = vadd.f32 %v897, %v926
        %v937 = vadd.f32 %v898, %v926
        %v938 = vadd.f32 %v899, %v926
        %v939 = vadd.f32 %v900, %v926
        %v940 = vadd.f32 %v901, %v926
        %v941 = vadd.f32 %v902, %v926
        %v942 = vadd.f32 %v903, %v926
        %v943 = vadd.f32 %v904, %v926
        %v944 = vadd.f32 %v905, %v926
        %v945 = vadd.f32 %v906, %v926
        %v946 = vadd.f32 %v907, %v926
        %v947 = vadd.f32 %v908, %v926
        %v948 = vadd.f32 %v909, %v926
        %v949 = vadd.f32 %v910, %v926
        %v950 = vadd.f32 %v911, %v926
        %v951 = vadd.f32 %v912, %v926
        %v952 = vadd.f32 %v913, %v926
        %v953 = vadd.f32 %v914, %v926
        %v954 = vadd.f32 %v915, %v926
        %v955 = vadd.f32 %v916, %v926
        %v956 = vadd.f32 %v917, %v926
        %v957 = vadd.f32 %v918, %v926
        %v958 = vadd.f32 %v919, %v926
        %v959 = vadd.f32 %v920, %v926
        %v960 = vxor.u32 %v928, 2147483648
        %v961 = vxor.u32 %v929, 2147483648
        %v962 = vxor.u32 %v930, 2147483648
        %v963 = vxor.u32 %v931, 2147483648
        %v964 = vxor.u32 %v932, 2147483648
        %v965 = vxor.u32 %v933, 2147483648
        %v966 = vxor.u32 %v934, 2147483648
        %v967 = vxor.u32 %v935, 2147483648
        %v968 = vxor.u32 %v936, 2147483648
        %v969 = vxor.u32 %v937, 2147483648
        %v970 = vxor.u32 %v938, 2147483648
        %v971 = vxor.u32 %v939, 2147483648
        %v972 = vxor.u32 %v940, 2147483648
        %v973 = vxor.u32 %v941, 2147483648
        %v974 = vxor.u32 %v942, 2147483648
        %v975 = vxor.u32 %v943, 2147483648
        %v976 = vxor.u32 %v944, 2147483648
        %v977 = vxor.u32 %v945, 2147483648
        %v978 = vxor.u32 %v946, 2147483648
        %v979 = vxor.u32 %v947, 2147483648
        %v980 = vxor.u32 %v948, 2147483648
        %v981 = vxor.u32 %v949, 2147483648
        %v982 = vxor.u32 %v950, 2147483648
        %v983 = vxor.u32 %v951, 2147483648
        %v984 = vxor.u32 %v952, 2147483648
        %v985 = vxor.u32 %v953, 2147483648
        %v986 = vxor.u32 %v954, 2147483648
        %v987 = vxor.u32 %v955, 2147483648
        %v988 = vxor.u32 %v956, 2147483648
        %v989 = vxor.u32 %v957, 2147483648
        %v990 = vxor.u32 %v958, 2147483648
        %v991 = vxor.u32 %v959, 2147483648
        %v992 = vmul.f32 %v960, 1.442695
        %v993 = vpow.pop %v992
        %v994 = vmul.f32 %v961, 1.442695
        %v995 = vpow.pop %v994
        %v996 = vmul.f32 %v962, 1.442695
        %v997 = vpow.pop %v996
        %v998 = vmul.f32 %v963, 1.442695
        %v999 = vpow.pop %v998
        %v1000 = vmul.f32 %v964, 1.442695
        %v1001 = vpow.pop %v1000
        %v1002 = vmul.f32 %v965, 1.442695
        %v1003 = vpow.pop %v1002
        %v1004 = vmul.f32 %v966, 1.442695
        %v1005 = vpow.pop %v1004
        %v1006 = vmul.f32 %v967, 1.442695
        %v1007 = vpow.pop %v1006
        %v1008 = vmul.f32 %v968, 1.442695
        %v1009 = vpow.pop %v1008
        %v1010 = vmul.f32 %v969, 1.442695
        %v1011 = vpow.pop %v1010
        %v1012 = vmul.f32 %v970, 1.442695
        %v1013 = vpow.pop %v1012
        %v1014 = vmul.f32 %v971, 1.442695
        %v1015 = vpow.pop %v1014
        %v1016 = vmul.f32 %v972, 1.442695
        %v1017 = vpow.pop %v1016
        %v1018 = vmul.f32 %v973, 1.442695
        %v1019 = vpow.pop %v1018
        %v1020 = vmul.f32 %v974, 1.442695
        %v1021 = vpow.pop %v1020
        %v1022 = vmul.f32 %v975, 1.442695
        %v1023 = vpow.pop %v1022
        %v1024 = vmul.f32 %v976, 1.442695
        %v1025 = vpow.pop %v1024
        %v1026 = vmul.f32 %v977, 1.442695
        %v1027 = vpow.pop %v1026
        %v1028 = vmul.f32 %v978, 1.442695
        %v1029 = vpow.pop %v1028
        %v1030 = vmul.f32 %v979, 1.442695
        %v1031 = vpow.pop %v1030
        %v1032 = vmul.f32 %v980, 1.442695
        %v1033 = vpow.pop %v1032
        %v1034 = vmul.f32 %v981, 1.442695
        %v1035 = vpow.pop %v1034
        %v1036 = vmul.f32 %v982, 1.442695
        %v1037 = vpow.pop %v1036
        %v1038 = vmul.f32 %v983, 1.442695
        %v1039 = vpow.pop %v1038
        %v1040 = vmul.f32 %v984, 1.442695
        %v1041 = vpow.pop %v1040
        %v1042 = vmul.f32 %v985, 1.442695
        %v1043 = vpow.pop %v1042
        %v1044 = vmul.f32 %v986, 1.442695
        %v1045 = vpow.pop %v1044
        %v1046 = vmul.f32 %v987, 1.442695
        %v1047 = vpow.pop %v1046
        %v1048 = vmul.f32 %v988, 1.442695
        %v1049 = vpow.pop %v1048
        %v1050 = vmul.f32 %v989, 1.442695
        %v1051 = vpow.pop %v1050
        %v1052 = vmul.f32 %v990, 1.442695
        %v1053 = vpow.pop %v1052
        %v1054 = vmul.f32 %v991, 1.442695
        %v1055 = vpow.pop %v1054
        %v1056 = vadd.f32 %v993, 1.0
        %v1057 = vadd.f32 %v995, 1.0
        %v1058 = vadd.f32 %v997, 1.0
        %v1059 = vadd.f32 %v999, 1.0
        %v1060 = vadd.f32 %v1001, 1.0
        %v1061 = vadd.f32 %v1003, 1.0
        %v1062 = vadd.f32 %v1005, 1.0
        %v1063 = vadd.f32 %v1007, 1.0
        %v1064 = vadd.f32 %v1009, 1.0
        %v1065 = vadd.f32 %v1011, 1.0
        %v1066 = vadd.f32 %v1013, 1.0
        %v1067 = vadd.f32 %v1015, 1.0
        %v1068 = vadd.f32 %v1017, 1.0
        %v1069 = vadd.f32 %v1019, 1.0
        %v1070 = vadd.f32 %v1021, 1.0
        %v1071 = vadd.f32 %v1023, 1.0
        %v1072 = vadd.f32 %v1025, 1.0
        %v1073 = vadd.f32 %v1027, 1.0
        %v1074 = vadd.f32 %v1029, 1.0
        %v1075 = vadd.f32 %v1031, 1.0
        %v1076 = vadd.f32 %v1033, 1.0
        %v1077 = vadd.f32 %v1035, 1.0
        %v1078 = vadd.f32 %v1037, 1.0
        %v1079 = vadd.f32 %v1039, 1.0
        %v1080 = vadd.f32 %v1041, 1.0
        %v1081 = vadd.f32 %v1043, 1.0
        %v1082 = vadd.f32 %v1045, 1.0
        %v1083 = vadd.f32 %v1047, 1.0
        %v1084 = vadd.f32 %v1049, 1.0
        %v1085 = vadd.f32 %v1051, 1.0
        %v1086 = vadd.f32 %v1053, 1.0
        %v1087 = vadd.f32 %v1055, 1.0
        %v1088 = vrcp.pop %v1056
        %v1089 = vmul.f32 1.0, %v1088
        %v1090 = vrcp.pop %v1057
        %v1091 = vmul.f32 1.0, %v1090
        %v1092 = vrcp.pop %v1058
        %v1093 = vmul.f32 1.0, %v1092
        %v1094 = vrcp.pop %v1059
        %v1095 = vmul.f32 1.0, %v1094
        %v1096 = vrcp.pop %v1060
        %v1097 = vmul.f32 1.0, %v1096
        %v1098 = vrcp.pop %v1061
        %v1099 = vmul.f32 1.0, %v1098
        %v1100 = vrcp.pop %v1062
        %v1101 = vmul.f32 1.0, %v1100
        %v1102 = vrcp.pop %v1063
        %v1103 = vmul.f32 1.0, %v1102
        %v1104 = vrcp.pop %v1064
        %v1105 = vmul.f32 1.0, %v1104
        %v1106 = vrcp.pop %v1065
        %v1107 = vmul.f32 1.0, %v1106
        %v1108 = vrcp.pop %v1066
        %v1109 = vmul.f32 1.0, %v1108
        %v1110 = vrcp.pop %v1067
        %v1111 = vmul.f32 1.0, %v1110
        %v1112 = vrcp.pop %v1068
        %v1113 = vmul.f32 1.0, %v1112
        %v1114 = vrcp.pop %v1069
        %v1115 = vmul.f32 1.0, %v1114
        %v1116 = vrcp.pop %v1070
        %v1117 = vmul.f32 1.0, %v1116
        %v1118 = vrcp.pop %v1071
        %v1119 = vmul.f32 1.0, %v1118
        %v1120 = vrcp.pop %v1072
        %v1121 = vmul.f32 1.0, %v1120
        %v1122 = vrcp.pop %v1073
        %v1123 = vmul.f32 1.0, %v1122
        %v1124 = vrcp.pop %v1074
        %v1125 = vmul.f32 1.0, %v1124
        %v1126 = vrcp.pop %v1075
        %v1127 = vmul.f32 1.0, %v1126
        %v1128 = vrcp.pop %v1076
        %v1129 = vmul.f32 1.0, %v1128
        %v1130 = vrcp.pop %v1077
        %v1131 = vmul.f32 1.0, %v1130
        %v1132 = vrcp.pop %v1078
        %v1133 = vmul.f32 1.0, %v1132
        %v1134 = vrcp.pop %v1079
        %v1135 = vmul.f32 1.0, %v1134
        %v1136 = vrcp.pop %v1080
        %v1137 = vmul.f32 1.0, %v1136
        %v1138 = vrcp.pop %v1081
        %v1139 = vmul.f32 1.0, %v1138
        %v1140 = vrcp.pop %v1082
        %v1141 = vmul.f32 1.0, %v1140
        %v1142 = vrcp.pop %v1083
        %v1143 = vmul.f32 1.0, %v1142
        %v1144 = vrcp.pop %v1084
        %v1145 = vmul.f32 1.0, %v1144
        %v1146 = vrcp.pop %v1085
        %v1147 = vmul.f32 1.0, %v1146
        %v1148 = vrcp.pop %v1086
        %v1149 = vmul.f32 1.0, %v1148
        %v1150 = vrcp.pop %v1087
        %v1151 = vmul.f32 1.0, %v1150
        %v1152 = vmul.f32 %v928, %v1089
        %v1153 = vmul.f32 %v929, %v1091
        %v1154 = vmul.f32 %v930, %v1093
        %v1155 = vmul.f32 %v931, %v1095
        %v1156 = vmul.f32 %v932, %v1097
        %v1157 = vmul.f32 %v933, %v1099
        %v1158 = vmul.f32 %v934, %v1101
        %v1159 = vmul.f32 %v935, %v1103
        %v1160 = vmul.f32 %v936, %v1105
        %v1161 = vmul.f32 %v937, %v1107
        %v1162 = vmul.f32 %v938, %v1109
        %v1163 = vmul.f32 %v939, %v1111
        %v1164 = vmul.f32 %v940, %v1113
        %v1165 = vmul.f32 %v941, %v1115
        %v1166 = vmul.f32 %v942, %v1117
        %v1167 = vmul.f32 %v943, %v1119
        %v1168 = vmul.f32 %v944, %v1121
        %v1169 = vmul.f32 %v945, %v1123
        %v1170 = vmul.f32 %v946, %v1125
        %v1171 = vmul.f32 %v947, %v1127
        %v1172 = vmul.f32 %v948, %v1129
        %v1173 = vmul.f32 %v949, %v1131
        %v1174 = vmul.f32 %v950, %v1133
        %v1175 = vmul.f32 %v951, %v1135
        %v1176 = vmul.f32 %v952, %v1137
        %v1177 = vmul.f32 %v953, %v1139
        %v1178 = vmul.f32 %v954, %v1141
        %v1179 = vmul.f32 %v955, %v1143
        %v1180 = vmul.f32 %v956, %v1145
        %v1181 = vmul.f32 %v957, %v1147
        %v1182 = vmul.f32 %v958, %v1149
        %v1183 = vmul.f32 %v959, %v1151
        %1184 = vst [vmem:[#allocation2] sm:$0xff] 0.0
        %1185 = vst [vmem:[#allocation2 + $0x8] sm:$0xff] 0.0
        %1186 = vst [vmem:[#allocation2 + $0x110] sm:$0xff] 0.0
        %1187 = vst [vmem:[#allocation2 + $0x118] sm:$0xff] 0.0
        %1188 = vst [vmem:[#allocation2 + $0x10] sm:$0xff] %v1152
        %1189 = vst [vmem:[#allocation2 + $0x18] sm:$0xff] %v1153
        %1190 = vst [vmem:[#allocation2 + $0x20] sm:$0xff] %v1154
        %1191 = vst [vmem:[#allocation2 + $0x28] sm:$0xff] %v1155
        %1192 = vst [vmem:[#allocation2 + $0x30] sm:$0xff] %v1156
        %1193 = vst [vmem:[#allocation2 + $0x38] sm:$0xff] %v1157
        %1194 = vst [vmem:[#allocation2 + $0x40] sm:$0xff] %v1158
        %1195 = vst [vmem:[#allocation2 + $0x48] sm:$0xff] %v1159
        %1196 = vst [vmem:[#allocation2 + $0x50] sm:$0xff] %v1160
        %1197 = vst [vmem:[#allocation2 + $0x58] sm:$0xff] %v1161
        %1198 = vst [vmem:[#allocation2 + $0x60] sm:$0xff] %v1162
        %1199 = vst [vmem:[#allocation2 + $0x68] sm:$0xff] %v1163
        %1200 = vst [vmem:[#allocation2 + $0x70] sm:$0xff] %v1164
        %1201 = vst [vmem:[#allocation2 + $0x78] sm:$0xff] %v1165
        %1202 = vst [vmem:[#allocation2 + $0x80] sm:$0xff] %v1166
        %1203 = vst [vmem:[#allocation2 + $0x88] sm:$0xff] %v1167
        %1204 = vst [vmem:[#allocation2 + $0x90] sm:$0xff] %v1168
        %1205 = vst [vmem:[#allocation2 + $0x98] sm:$0xff] %v1169
        %1206 = vst [vmem:[#allocation2 + $0xa0] sm:$0xff] %v1170
        %1207 = vst [vmem:[#allocation2 + $0xa8] sm:$0xff] %v1171
        %1208 = vst [vmem:[#allocation2 + $0xb0] sm:$0xff] %v1172
        %1209 = vst [vmem:[#allocation2 + $0xb8] sm:$0xff] %v1173
        %1210 = vst [vmem:[#allocation2 + $0xc0] sm:$0xff] %v1174
        %1211 = vst [vmem:[#allocation2 + $0xc8] sm:$0xff] %v1175
        %1212 = vst [vmem:[#allocation2 + $0xd0] sm:$0xff] %v1176
        %1213 = vst [vmem:[#allocation2 + $0xd8] sm:$0xff] %v1177
        %1214 = vst [vmem:[#allocation2 + $0xe0] sm:$0xff] %v1178
        %1215 = vst [vmem:[#allocation2 + $0xe8] sm:$0xff] %v1179
        %1216 = vst [vmem:[#allocation2 + $0xf0] sm:$0xff] %v1180
        %1217 = vst [vmem:[#allocation2 + $0xf8] sm:$0xff] %v1181
        %1218 = vst [vmem:[#allocation2 + $0x100] sm:$0xff] %v1182
        %1219 = vst [vmem:[#allocation2 + $0x108] sm:$0xff] %v1183
        %s1220 = scalar_lea.vmem %s2, 128
        %v1221 = vld [vmem:[%s1220] sm:$0xff]
        %v1222 = vld [vmem:[%s1220 + $0x8] sm:$0xff]
        %v1223 = vld [vmem:[%s1220 + $0x10] sm:$0xff]
        %v1224 = vld [vmem:[%s1220 + $0x18] sm:$0xff]
        %v1225 = vld [vmem:[%s1220 + $0x20] sm:$0xff]
        %v1226 = vld [vmem:[%s1220 + $0x28] sm:$0xff]
        %v1227 = vld [vmem:[%s1220 + $0x30] sm:$0xff]
        %v1228 = vld [vmem:[%s1220 + $0x38] sm:$0xff]
        %v1229 = vld [vmem:[%s1220 + $0x40] sm:$0xff]
        %v1230 = vld [vmem:[%s1220 + $0x48] sm:$0xff]
        %v1231 = vld [vmem:[%s1220 + $0x50] sm:$0xff]
        %v1232 = vld [vmem:[%s1220 + $0x58] sm:$0xff]
        %v1233 = vld [vmem:[%s1220 + $0x60] sm:$0xff]
        %v1234 = vld [vmem:[%s1220 + $0x68] sm:$0xff]
        %v1235 = vld [vmem:[%s1220 + $0x70] sm:$0xff]
        %v1236 = vld [vmem:[%s1220 + $0x78] sm:$0xff]
        %v1237 = vld [vmem:[#allocation2] sm:$0xff]
        %v1238 = vld [vmem:[#allocation2 + $0x8] sm:$0xff]
        %v1239 = vld [vmem:[#allocation2 + $0x10] sm:$0xff]
        %v1240 = vld [vmem:[#allocation2 + $0x18] sm:$0xff]
        %v1241 = vld [vmem:[#allocation2 + $0x20] sm:$0xff]
        %v1242 = vld [vmem:[#allocation2 + $0x28] sm:$0xff]
        %v1243 = vld [vmem:[#allocation2 + $0x30] sm:$0xff]
        %v1244 = vld [vmem:[#allocation2 + $0x38] sm:$0xff]
        %v1245 = vld [vmem:[#allocation2 + $0x40] sm:$0xff]
        %v1246 = vld [vmem:[#allocation2 + $0x48] sm:$0xff]
        %v1247 = vld [vmem:[#allocation2 + $0x50] sm:$0xff]
        %v1248 = vld [vmem:[#allocation2 + $0x58] sm:$0xff]
        %v1249 = vld [vmem:[#allocation2 + $0x60] sm:$0xff]
        %v1250 = vld [vmem:[#allocation2 + $0x68] sm:$0xff]
        %v1251 = vld [vmem:[#allocation2 + $0x70] sm:$0xff]
        %v1252 = vld [vmem:[#allocation2 + $0x78] sm:$0xff]
        %v1253 = vld [vmem:[#allocation2 + $0x80] sm:$0xff]
        %v1254 = vld [vmem:[#allocation2 + $0x88] sm:$0xff]
        %v1255 = vld [vmem:[#allocation2 + $0x90] sm:$0xff]
        %v1256 = vld [vmem:[#allocation2 + $0x98] sm:$0xff]
        %v1257 = vld [vmem:[#allocation2 + $0xa0] sm:$0xff]
        %v1258 = vld [vmem:[#allocation2 + $0xa8] sm:$0xff]
        %v1259 = vld [vmem:[#allocation2 + $0xb0] sm:$0xff]
        %v1260 = vld [vmem:[#allocation2 + $0xb8] sm:$0xff]
        %v1261 = vld [vmem:[#allocation2 + $0xc0] sm:$0xff]
        %v1262 = vld [vmem:[#allocation2 + $0xc8] sm:$0xff]
        %v1263 = vld [vmem:[#allocation2 + $0xd0] sm:$0xff]
        %v1264 = vld [vmem:[#allocation2 + $0xd8] sm:$0xff]
        %v1265 = vld [vmem:[#allocation2 + $0xe0] sm:$0xff]
        %v1266 = vld [vmem:[#allocation2 + $0xe8] sm:$0xff]
        %v1267 = vld [vmem:[#allocation2 + $0xf0] sm:$0xff]
        %v1268 = vld [vmem:[#allocation2 + $0xf8] sm:$0xff]
        %v1269 = vld [vmem:[%s2] sm:$0xff]
        %v1270 = vld [vmem:[%s2 + $0x8] sm:$0xff]
        %v1271 = vld [vmem:[%s2 + $0x10] sm:$0xff]
        %v1272 = vld [vmem:[%s2 + $0x18] sm:$0xff]
        %v1273 = vld [vmem:[%s2 + $0x20] sm:$0xff]
        %v1274 = vld [vmem:[%s2 + $0x28] sm:$0xff]
        %v1275 = vld [vmem:[%s2 + $0x30] sm:$0xff]
        %v1276 = vld [vmem:[%s2 + $0x38] sm:$0xff]
        %v1277 = vld [vmem:[%s2 + $0x40] sm:$0xff]
        %v1278 = vld [vmem:[%s2 + $0x48] sm:$0xff]
        %v1279 = vld [vmem:[%s2 + $0x50] sm:$0xff]
        %v1280 = vld [vmem:[%s2 + $0x58] sm:$0xff]
        %v1281 = vld [vmem:[%s2 + $0x60] sm:$0xff]
        %v1282 = vld [vmem:[%s2 + $0x68] sm:$0xff]
        %v1283 = vld [vmem:[%s2 + $0x70] sm:$0xff]
        %v1284 = vld [vmem:[%s2 + $0x78] sm:$0xff]
        %1285 = vmatprep.subr.mxu0 0.0
        %1286 = vmatpush1.msra.mxu0 %v1269
        %1287 = vmatprep.subr.mxu0 0.0
        %1288 = vmatpush1.msra.mxu0 %v1270
        %1289 = vmatprep.subr.mxu0 0.0
        %1290 = vmatpush1.msra.mxu0 %v1271
        %1291 = vmatprep.subr.mxu0 0.0
        %1292 = vmatpush1.msra.mxu0 %v1272
        %1293 = vmatprep.subr.mxu0 0.0
        %1294 = vmatpush1.msra.mxu0 %v1273
        %1295 = vmatprep.subr.mxu0 0.0
        %1296 = vmatpush1.msra.mxu0 %v1274
        %1297 = vmatprep.subr.mxu0 0.0
        %1298 = vmatpush1.msra.mxu0 %v1275
        %1299 = vmatprep.subr.mxu0 0.0
        %1300 = vmatpush1.msra.mxu0 %v1276
        %1301 = vmatprep.subr.mxu0 0.0
        %1302 = vmatpush1.msra.mxu0 %v1277
        %1303 = vmatprep.subr.mxu0 0.0
        %1304 = vmatpush1.msra.mxu0 %v1278
        %1305 = vmatprep.subr.mxu0 0.0
        %1306 = vmatpush1.msra.mxu0 %v1279
        %1307 = vmatprep.subr.mxu0 0.0
        %1308 = vmatpush1.msra.mxu0 %v1280
        %1309 = vmatprep.subr.mxu0 0.0
        %1310 = vmatpush1.msra.mxu0 %v1281
        %1311 = vmatprep.subr.mxu0 0.0
        %1312 = vmatpush1.msra.mxu0 %v1282
        %1313 = vmatprep.subr.mxu0 0.0
        %1314 = vmatpush1.msra.mxu0 %v1283
        %1315 = vmatprep.subr.mxu0 0.0
        %1316 = vmatpush1.msra.mxu0 %v1284
        %1317 = vmatprep.subr.mxu0 0.0
        %1318 = vmatpush1.msra.mxu0 0.0
        %1319 = vmatprep.subr.mxu0 0.0
        %1320 = vmatpush1.msra.mxu0 0.0
        %1321 = vmatprep.subr.mxu0 0.0
        %1322 = vmatpush1.msra.mxu0 0.0
        %1323 = vmatprep.subr.mxu0 0.0
        %1324 = vmatpush1.msra.mxu0 0.0
        %1325 = vmatprep.subr.mxu0 0.0
        %1326 = vmatpush1.msra.mxu0 0.0
        %1327 = vmatprep.subr.mxu0 0.0
        %1328 = vmatpush1.msra.mxu0 0.0
        %1329 = vmatprep.subr.mxu0 0.0
        %1330 = vmatpush1.msra.mxu0 0.0
        %1331 = vmatprep.subr.mxu0 0.0
        %1332 = vmatpush1.msra.mxu0 0.0
        %1333 = vmatprep.subr.mxu0 0.0
        %1334 = vmatpush1.msra.mxu0 0.0
        %1335 = vmatprep.subr.mxu0 0.0
        %1336 = vmatpush1.msra.mxu0 0.0
        %1337 = vmatprep.subr.mxu0 0.0
        %1338 = vmatpush1.msra.mxu0 0.0
        %1339 = vmatprep.subr.mxu0 0.0
        %1340 = vmatpush1.msra.mxu0 0.0
        %1341 = vmatprep.subr.mxu0 0.0
        %1342 = vmatpush1.msra.mxu0 0.0
        %1343 = vmatprep.subr.mxu0 0.0
        %1344 = vmatpush1.msra.mxu0 0.0
        %1345 = vmatprep.subr.mxu0 0.0
        %1346 = vmatpush1.msra.mxu0 0.0
        %1347 = vmatprep.subr.mxu0 0.0
        %1348 = vmatpush1.msra.mxu0 0.0
        %1349 = vmatprep.mubr.f32.mxu0 0.0
        %1350 = vmatmul.mubr.f32.gmra.mrb[0].mxu0 %v1237
        %v1351 = vpop.f32.mrb[0].mxu0
        %v1352 = vadd.f32 0.0, %v1351
        %v1353 = vpop.f32.mrb[0].mxu0
        %1354 = vmatprep.mubr.f32.mxu0 0.0
        %1355 = vmatmul.mubr.f32.gmra.mrb[0].mxu0 %v1238
        %v1356 = vpop.f32.mrb[0].mxu0
        %v1357 = vadd.f32 0.0, %v1356
        %v1358 = vpop.f32.mrb[0].mxu0
        %1359 = vmatprep.mubr.f32.mxu0 0.0
        %1360 = vmatmul.mubr.f32.gmra.mrb[0].mxu0 %v1239
        %v1361 = vpop.f32.mrb[0].mxu0
        %v1362 = vadd.f32 0.0, %v1361
        %v1363 = vpop.f32.mrb[0].mxu0
        %1364 = vmatprep.mubr.f32.mxu0 0.0
        %1365 = vmatmul.mubr.f32.gmra.mrb[0].mxu0 %v1240
        %v1366 = vpop.f32.mrb[0].mxu0
        %v1367 = vadd.f32 0.0, %v1366
        %v1368 = vpop.f32.mrb[0].mxu0
        %1369 = vmatprep.mubr.f32.mxu0 0.0
        %1370 = vmatmul.mubr.f32.gmra.mrb[0].mxu0 %v1241
        %v1371 = vpop.f32.mrb[0].mxu0
        %v1372 = vadd.f32 0.0, %v1371
        %v1373 = vpop.f32.mrb[0].mxu0
        %1374 = vmatprep.mubr.f32.mxu0 0.0
        %1375 = vmatmul.mubr.f32.gmra.mrb[0].mxu0 %v1242
        %v1376 = vpop.f32.mrb[0].mxu0
        %v1377 = vadd.f32 0.0, %v1376
        %v1378 = vpop.f32.mrb[0].mxu0
        %1379 = vmatprep.mubr.f32.mxu0 0.0
        %1380 = vmatmul.mubr.f32.gmra.mrb[0].mxu0 %v1243
        %v1381 = vpop.f32.mrb[0].mxu0
        %v1382 = vadd.f32 0.0, %v1381
        %v1383 = vpop.f32.mrb[0].mxu0
        %1384 = vmatprep.mubr.f32.mxu0 0.0
        %1385 = vmatmul.mubr.f32.gmra.mrb[0].mxu0 %v1244
        %v1386 = vpop.f32.mrb[0].mxu0
        %v1387 = vadd.f32 0.0, %v1386
        %v1388 = vpop.f32.mrb[0].mxu0
        %1389 = vmatprep.mubr.f32.mxu0 0.0
        %1390 = vmatmul.mubr.f32.gmra.mrb[0].mxu0 %v1245
        %v1391 = vpop.f32.mrb[0].mxu0
        %v1392 = vadd.f32 0.0, %v1391
        %v1393 = vpop.f32.mrb[0].mxu0
        %1394 = vmatprep.mubr.f32.mxu0 0.0
        %1395 = vmatmul.mubr.f32.gmra.mrb[0].mxu0 %v1246
        %v1396 = vpop.f32.mrb[0].mxu0
        %v1397 = vadd.f32 0.0, %v1396
        %v1398 = vpop.f32.mrb[0].mxu0
        %1399 = vmatprep.mubr.f32.mxu0 0.0
        %1400 = vmatmul.mubr.f32.gmra.mrb[0].mxu0 %v1247
        %v1401 = vpop.f32.mrb[0].mxu0
        %v1402 = vadd.f32 0.0, %v1401
        %v1403 = vpop.f32.mrb[0].mxu0
        %1404 = vmatprep.mubr.f32.mxu0 0.0
        %1405 = vmatmul.mubr.f32.gmra.mrb[0].mxu0 %v1248
        %v1406 = vpop.f32.mrb[0].mxu0
        %v1407 = vadd.f32 0.0, %v1406
        %v1408 = vpop.f32.mrb[0].mxu0
        %1409 = vmatprep.mubr.f32.mxu0 0.0
        %1410 = vmatmul.mubr.f32.gmra.mrb[0].mxu0 %v1249
        %v1411 = vpop.f32.mrb[0].mxu0
        %v1412 = vadd.f32 0.0, %v1411
        %v1413 = vpop.f32.mrb[0].mxu0
        %1414 = vmatprep.mubr.f32.mxu0 0.0
        %1415 = vmatmul.mubr.f32.gmra.mrb[0].mxu0 %v1250
        %v1416 = vpop.f32.mrb[0].mxu0
        %v1417 = vadd.f32 0.0, %v1416
        %v1418 = vpop.f32.mrb[0].mxu0
        %1419 = vmatprep.mubr.f32.mxu0 0.0
        %1420 = vmatmul.mubr.f32.gmra.mrb[0].mxu0 %v1251
        %v1421 = vpop.f32.mrb[0].mxu0
        %v1422 = vadd.f32 0.0, %v1421
        %v1423 = vpop.f32.mrb[0].mxu0
        %1424 = vmatprep.mubr.f32.mxu0 0.0
        %1425 = vmatmul.mubr.f32.gmra.mrb[0].mxu0 %v1252
        %v1426 = vpop.f32.mrb[0].mxu0
        %v1427 = vadd.f32 0.0, %v1426
        %v1428 = vpop.f32.mrb[0].mxu0
        %1429 = vmatprep.mubr.f32.mxu0 0.0
        %1430 = vmatmul.mubr.f32.gmra.mrb[0].mxu0 %v1253
        %v1431 = vpop.f32.mrb[0].mxu0
        %v1432 = vadd.f32 0.0, %v1431
        %v1433 = vpop.f32.mrb[0].mxu0
        %1434 = vmatprep.mubr.f32.mxu0 0.0
        %1435 = vmatmul.mubr.f32.gmra.mrb[0].mxu0 %v1254
        %v1436 = vpop.f32.mrb[0].mxu0
        %v1437 = vadd.f32 0.0, %v1436
        %v1438 = vpop.f32.mrb[0].mxu0
        %1439 = vmatprep.mubr.f32.mxu0 0.0
        %1440 = vmatmul.mubr.f32.gmra.mrb[0].mxu0 %v1255
        %v1441 = vpop.f32.mrb[0].mxu0
        %v1442 = vadd.f32 0.0, %v1441
        %v1443 = vpop.f32.mrb[0].mxu0
        %1444 = vmatprep.mubr.f32.mxu0 0.0
        %1445 = vmatmul.mubr.f32.gmra.mrb[0].mxu0 %v1256
        %v1446 = vpop.f32.mrb[0].mxu0
        %v1447 = vadd.f32 0.0, %v1446
        %v1448 = vpop.f32.mrb[0].mxu0
        %1449 = vmatprep.mubr.f32.mxu0 0.0
        %1450 = vmatmul.mubr.f32.gmra.mrb[0].mxu0 %v1257
        %v1451 = vpop.f32.mrb[0].mxu0
        %v1452 = vadd.f32 0.0, %v1451
        %v1453 = vpop.f32.mrb[0].mxu0
        %1454 = vmatprep.mubr.f32.mxu0 0.0
        %1455 = vmatmul.mubr.f32.gmra.mrb[0].mxu0 %v1258
        %v1456 = vpop.f32.mrb[0].mxu0
        %v1457 = vadd.f32 0.0, %v1456
        %v1458 = vpop.f32.mrb[0].mxu0
        %1459 = vmatprep.mubr.f32.mxu0 0.0
        %1460 = vmatmul.mubr.f32.gmra.mrb[0].mxu0 %v1259
        %v1461 = vpop.f32.mrb[0].mxu0
        %v1462 = vadd.f32 0.0, %v1461
        %v1463 = vpop.f32.mrb[0].mxu0
        %1464 = vmatprep.mubr.f32.mxu0 0.0
        %1465 = vmatmul.mubr.f32.gmra.mrb[0].mxu0 %v1260
        %v1466 = vpop.f32.mrb[0].mxu0
        %v1467 = vadd.f32 0.0, %v1466
        %v1468 = vpop.f32.mrb[0].mxu0
        %1469 = vmatprep.mubr.f32.mxu0 0.0
        %1470 = vmatmul.mubr.f32.gmra.mrb[0].mxu0 %v1261
        %v1471 = vpop.f32.mrb[0].mxu0
        %v1472 = vadd.f32 0.0, %v1471
        %v1473 = vpop.f32.mrb[0].mxu0
        %1474 = vmatprep.mubr.f32.mxu0 0.0
        %1475 = vmatmul.mubr.f32.gmra.mrb[0].mxu0 %v1262
        %v1476 = vpop.f32.mrb[0].mxu0
        %v1477 = vadd.f32 0.0, %v1476
        %v1478 = vpop.f32.mrb[0].mxu0
        %1479 = vmatprep.mubr.f32.mxu0 0.0
        %1480 = vmatmul.mubr.f32.gmra.mrb[0].mxu0 %v1263
        %v1481 = vpop.f32.mrb[0].mxu0
        %v1482 = vadd.f32 0.0, %v1481
        %v1483 = vpop.f32.mrb[0].mxu0
        %1484 = vmatprep.mubr.f32.mxu0 0.0
        %1485 = vmatmul.mubr.f32.gmra.mrb[0].mxu0 %v1264
        %v1486 = vpop.f32.mrb[0].mxu0
        %v1487 = vadd.f32 0.0, %v1486
        %v1488 = vpop.f32.mrb[0].mxu0
        %1489 = vmatprep.mubr.f32.mxu0 0.0
        %1490 = vmatmul.mubr.f32.gmra.mrb[0].mxu0 %v1265
        %v1491 = vpop.f32.mrb[0].mxu0
        %v1492 = vadd.f32 0.0, %v1491
        %v1493 = vpop.f32.mrb[0].mxu0
        %1494 = vmatprep.mubr.f32.mxu0 0.0
        %1495 = vmatmul.mubr.f32.gmra.mrb[0].mxu0 %v1266
        %v1496 = vpop.f32.mrb[0].mxu0
        %v1497 = vadd.f32 0.0, %v1496
        %v1498 = vpop.f32.mrb[0].mxu0
        %1499 = vmatprep.mubr.f32.mxu0 0.0
        %1500 = vmatmul.mubr.f32.gmra.mrb[0].mxu0 %v1267
        %v1501 = vpop.f32.mrb[0].mxu0
        %v1502 = vadd.f32 0.0, %v1501
        %v1503 = vpop.f32.mrb[0].mxu0
        %1504 = vmatprep.mubr.f32.mxu0 0.0
        %1505 = vmatmul.mubr.f32.gmra.mrb[0].mxu0 %v1268
        %v1506 = vpop.f32.mrb[0].mxu0
        %v1507 = vadd.f32 0.0, %v1506
        %v1508 = vpop.f32.mrb[0].mxu0
        %1509 = vdwg.mxu0
        %1510 = vmatprep.subr.mxu0 0.0
        %1511 = vmatpush1.msra.mxu0 %v1221
        %1512 = vmatprep.subr.mxu0 0.0
        %1513 = vmatpush1.msra.mxu0 %v1222
        %1514 = vmatprep.subr.mxu0 0.0
        %1515 = vmatpush1.msra.mxu0 %v1223
        %1516 = vmatprep.subr.mxu0 0.0
        %1517 = vmatpush1.msra.mxu0 %v1224
        %1518 = vmatprep.subr.mxu0 0.0
        %1519 = vmatpush1.msra.mxu0 %v1225
        %1520 = vmatprep.subr.mxu0 0.0
        %1521 = vmatpush1.msra.mxu0 %v1226
        %1522 = vmatprep.subr.mxu0 0.0
        %1523 = vmatpush1.msra.mxu0 %v1227
        %1524 = vmatprep.subr.mxu0 0.0
        %1525 = vmatpush1.msra.mxu0 %v1228
        %1526 = vmatprep.subr.mxu0 0.0
        %1527 = vmatpush1.msra.mxu0 %v1229
        %1528 = vmatprep.subr.mxu0 0.0
        %1529 = vmatpush1.msra.mxu0 %v1230
        %1530 = vmatprep.subr.mxu0 0.0
        %1531 = vmatpush1.msra.mxu0 %v1231
        %1532 = vmatprep.subr.mxu0 0.0
        %1533 = vmatpush1.msra.mxu0 %v1232
        %1534 = vmatprep.subr.mxu0 0.0
        %1535 = vmatpush1.msra.mxu0 %v1233
        %1536 = vmatprep.subr.mxu0 0.0
        %1537 = vmatpush1.msra.mxu0 %v1234
        %1538 = vmatprep.subr.mxu0 0.0
        %1539 = vmatpush1.msra.mxu0 %v1235
        %1540 = vmatprep.subr.mxu0 0.0
        %1541 = vmatpush1.msra.mxu0 %v1236
        %1542 = vmatprep.subr.mxu0 0.0
        %1543 = vmatpush1.msra.mxu0 0.0
        %1544 = vmatprep.subr.mxu0 0.0
        %1545 = vmatpush1.msra.mxu0 0.0
        %1546 = vmatprep.subr.mxu0 0.0
        %1547 = vmatpush1.msra.mxu0 0.0
        %1548 = vmatprep.subr.mxu0 0.0
        %1549 = vmatpush1.msra.mxu0 0.0
        %1550 = vmatprep.subr.mxu0 0.0
        %1551 = vmatpush1.msra.mxu0 0.0
        %1552 = vmatprep.subr.mxu0 0.0
        %1553 = vmatpush1.msra.mxu0 0.0
        %1554 = vmatprep.subr.mxu0 0.0
        %1555 = vmatpush1.msra.mxu0 0.0
        %1556 = vmatprep.subr.mxu0 0.0
        %1557 = vmatpush1.msra.mxu0 0.0
        %1558 = vmatprep.subr.mxu0 0.0
        %1559 = vmatpush1.msra.mxu0 0.0
        %1560 = vmatprep.subr.mxu0 0.0
        %1561 = vmatpush1.msra.mxu0 0.0
        %1562 = vmatprep.subr.mxu0 0.0
        %1563 = vmatpush1.msra.mxu0 0.0
        %1564 = vmatprep.subr.mxu0 0.0
        %1565 = vmatpush1.msra.mxu0 0.0
        %1566 = vmatprep.subr.mxu0 0.0
        %1567 = vmatpush1.msra.mxu0 0.0
        %1568 = vmatprep.subr.mxu0 0.0
        %1569 = vmatpush1.msra.mxu0 0.0
        %1570 = vmatprep.subr.mxu0 0.0
        %1571 = vmatpush1.msra.mxu0 0.0
        %1572 = vmatprep.subr.mxu0 0.0
        %1573 = vmatpush1.msra.mxu0 0.0
        %1574 = vmatprep.mubr.f32.mxu0 0.0
        %1575 = vmatmul.mubr.f32.gmra.mrb[0].mxu0 %v1152
        %v1576 = vpop.f32.mrb[0].mxu0
        %v1577 = vadd.f32 %v1352, %v1576
        %v1578 = vpop.f32.mrb[0].mxu0
        %1579 = vmatprep.mubr.f32.mxu0 0.0
        %1580 = vmatmul.mubr.f32.gmra.mrb[0].mxu0 %v1153
        %v1581 = vpop.f32.mrb[0].mxu0
        %v1582 = vadd.f32 %v1357, %v1581
        %v1583 = vpop.f32.mrb[0].mxu0
        %1584 = vmatprep.mubr.f32.mxu0 0.0
        %1585 = vmatmul.mubr.f32.gmra.mrb[0].mxu0 %v1154
        %v1586 = vpop.f32.mrb[0].mxu0
        %v1587 = vadd.f32 %v1362, %v1586
        %v1588 = vpop.f32.mrb[0].mxu0
        %1589 = vmatprep.mubr.f32.mxu0 0.0
        %1590 = vmatmul.mubr.f32.gmra.mrb[0].mxu0 %v1155
        %v1591 = vpop.f32.mrb[0].mxu0
        %v1592 = vadd.f32 %v1367, %v1591
        %v1593 = vpop.f32.mrb[0].mxu0
        %1594 = vmatprep.mubr.f32.mxu0 0.0
        %1595 = vmatmul.mubr.f32.gmra.mrb[0].mxu0 %v1156
        %v1596 = vpop.f32.mrb[0].mxu0
        %v1597 = vadd.f32 %v1372, %v1596
        %v1598 = vpop.f32.mrb[0].mxu0
        %1599 = vmatprep.mubr.f32.mxu0 0.0
        %1600 = vmatmul.mubr.f32.gmra.mrb[0].mxu0 %v1157
        %v1601 = vpop.f32.mrb[0].mxu0
        %v1602 = vadd.f32 %v1377, %v1601
        %v1603 = vpop.f32.mrb[0].mxu0
        %1604 = vmatprep.mubr.f32.mxu0 0.0
        %1605 = vmatmul.mubr.f32.gmra.mrb[0].mxu0 %v1158
        %v1606 = vpop.f32.mrb[0].mxu0
        %v1607 = vadd.f32 %v1382, %v1606
        %v1608 = vpop.f32.mrb[0].mxu0
        %1609 = vmatprep.mubr.f32.mxu0 0.0
        %1610 = vmatmul.mubr.f32.gmra.mrb[0].mxu0 %v1159
        %v1611 = vpop.f32.mrb[0].mxu0
        %v1612 = vadd.f32 %v1387, %v1611
        %v1613 = vpop.f32.mrb[0].mxu0
        %1614 = vmatprep.mubr.f32.mxu0 0.0
        %1615 = vmatmul.mubr.f32.gmra.mrb[0].mxu0 %v1160
        %v1616 = vpop.f32.mrb[0].mxu0
        %v1617 = vadd.f32 %v1392, %v1616
        %v1618 = vpop.f32.mrb[0].mxu0
        %1619 = vmatprep.mubr.f32.mxu0 0.0
        %1620 = vmatmul.mubr.f32.gmra.mrb[0].mxu0 %v1161
        %v1621 = vpop.f32.mrb[0].mxu0
        %v1622 = vadd.f32 %v1397, %v1621
        %v1623 = vpop.f32.mrb[0].mxu0
        %1624 = vmatprep.mubr.f32.mxu0 0.0
        %1625 = vmatmul.mubr.f32.gmra.mrb[0].mxu0 %v1162
        %v1626 = vpop.f32.mrb[0].mxu0
        %v1627 = vadd.f32 %v1402, %v1626
        %v1628 = vpop.f32.mrb[0].mxu0
        %1629 = vmatprep.mubr.f32.mxu0 0.0
        %1630 = vmatmul.mubr.f32.gmra.mrb[0].mxu0 %v1163
        %v1631 = vpop.f32.mrb[0].mxu0
        %v1632 = vadd.f32 %v1407, %v1631
        %v1633 = vpop.f32.mrb[0].mxu0
        %1634 = vmatprep.mubr.f32.mxu0 0.0
        %1635 = vmatmul.mubr.f32.gmra.mrb[0].mxu0 %v1164
        %v1636 = vpop.f32.mrb[0].mxu0
        %v1637 = vadd.f32 %v1412, %v1636
        %v1638 = vpop.f32.mrb[0].mxu0
        %1639 = vmatprep.mubr.f32.mxu0 0.0
        %1640 = vmatmul.mubr.f32.gmra.mrb[0].mxu0 %v1165
        %v1641 = vpop.f32.mrb[0].mxu0
        %v1642 = vadd.f32 %v1417, %v1641
        %v1643 = vpop.f32.mrb[0].mxu0
        %1644 = vmatprep.mubr.f32.mxu0 0.0
        %1645 = vmatmul.mubr.f32.gmra.mrb[0].mxu0 %v1166
        %v1646 = vpop.f32.mrb[0].mxu0
        %v1647 = vadd.f32 %v1422, %v1646
        %v1648 = vpop.f32.mrb[0].mxu0
        %1649 = vmatprep.mubr.f32.mxu0 0.0
        %1650 = vmatmul.mubr.f32.gmra.mrb[0].mxu0 %v1167
        %v1651 = vpop.f32.mrb[0].mxu0
        %v1652 = vadd.f32 %v1427, %v1651
        %v1653 = vpop.f32.mrb[0].mxu0
        %1654 = vmatprep.mubr.f32.mxu0 0.0
        %1655 = vmatmul.mubr.f32.gmra.mrb[0].mxu0 %v1168
        %v1656 = vpop.f32.mrb[0].mxu0
        %v1657 = vadd.f32 %v1432, %v1656
        %v1658 = vpop.f32.mrb[0].mxu0
        %1659 = vmatprep.mubr.f32.mxu0 0.0
        %1660 = vmatmul.mubr.f32.gmra.mrb[0].mxu0 %v1169
        %v1661 = vpop.f32.mrb[0].mxu0
        %v1662 = vadd.f32 %v1437, %v1661
        %v1663 = vpop.f32.mrb[0].mxu0
        %1664 = vmatprep.mubr.f32.mxu0 0.0
        %1665 = vmatmul.mubr.f32.gmra.mrb[0].mxu0 %v1170
        %v1666 = vpop.f32.mrb[0].mxu0
        %v1667 = vadd.f32 %v1442, %v1666
        %v1668 = vpop.f32.mrb[0].mxu0
        %1669 = vmatprep.mubr.f32.mxu0 0.0
        %1670 = vmatmul.mubr.f32.gmra.mrb[0].mxu0 %v1171
        %v1671 = vpop.f32.mrb[0].mxu0
        %v1672 = vadd.f32 %v1447, %v1671
        %v1673 = vpop.f32.mrb[0].mxu0
        %1674 = vmatprep.mubr.f32.mxu0 0.0
        %1675 = vmatmul.mubr.f32.gmra.mrb[0].mxu0 %v1172
        %v1676 = vpop.f32.mrb[0].mxu0
        %v1677 = vadd.f32 %v1452, %v1676
        %v1678 = vpop.f32.mrb[0].mxu0
        %1679 = vmatprep.mubr.f32.mxu0 0.0
        %1680 = vmatmul.mubr.f32.gmra.mrb[0].mxu0 %v1173
        %v1681 = vpop.f32.mrb[0].mxu0
        %v1682 = vadd.f32 %v1457, %v1681
        %v1683 = vpop.f32.mrb[0].mxu0
        %1684 = vmatprep.mubr.f32.mxu0 0.0
        %1685 = vmatmul.mubr.f32.gmra.mrb[0].mxu0 %v1174
        %v1686 = vpop.f32.mrb[0].mxu0
        %v1687 = vadd.f32 %v1462, %v1686
        %v1688 = vpop.f32.mrb[0].mxu0
        %1689 = vmatprep.mubr.f32.mxu0 0.0
        %1690 = vmatmul.mubr.f32.gmra.mrb[0].mxu0 %v1175
        %v1691 = vpop.f32.mrb[0].mxu0
        %v1692 = vadd.f32 %v1467, %v1691
        %v1693 = vpop.f32.mrb[0].mxu0
        %1694 = vmatprep.mubr.f32.mxu0 0.0
        %1695 = vmatmul.mubr.f32.gmra.mrb[0].mxu0 %v1176
        %v1696 = vpop.f32.mrb[0].mxu0
        %v1697 = vadd.f32 %v1472, %v1696
        %v1698 = vpop.f32.mrb[0].mxu0
        %1699 = vmatprep.mubr.f32.mxu0 0.0
        %1700 = vmatmul.mubr.f32.gmra.mrb[0].mxu0 %v1177
        %v1701 = vpop.f32.mrb[0].mxu0
        %v1702 = vadd.f32 %v1477, %v1701
        %v1703 = vpop.f32.mrb[0].mxu0
        %1704 = vmatprep.mubr.f32.mxu0 0.0
        %1705 = vmatmul.mubr.f32.gmra.mrb[0].mxu0 %v1178
        %v1706 = vpop.f32.mrb[0].mxu0
        %v1707 = vadd.f32 %v1482, %v1706
        %v1708 = vpop.f32.mrb[0].mxu0
        %1709 = vmatprep.mubr.f32.mxu0 0.0
        %1710 = vmatmul.mubr.f32.gmra.mrb[0].mxu0 %v1179
        %v1711 = vpop.f32.mrb[0].mxu0
        %v1712 = vadd.f32 %v1487, %v1711
        %v1713 = vpop.f32.mrb[0].mxu0
        %1714 = vmatprep.mubr.f32.mxu0 0.0
        %1715 = vmatmul.mubr.f32.gmra.mrb[0].mxu0 %v1180
        %v1716 = vpop.f32.mrb[0].mxu0
        %v1717 = vadd.f32 %v1492, %v1716
        %v1718 = vpop.f32.mrb[0].mxu0
        %1719 = vmatprep.mubr.f32.mxu0 0.0
        %1720 = vmatmul.mubr.f32.gmra.mrb[0].mxu0 %v1181
        %v1721 = vpop.f32.mrb[0].mxu0
        %v1722 = vadd.f32 %v1497, %v1721
        %v1723 = vpop.f32.mrb[0].mxu0
        %1724 = vmatprep.mubr.f32.mxu0 0.0
        %1725 = vmatmul.mubr.f32.gmra.mrb[0].mxu0 %v1182
        %v1726 = vpop.f32.mrb[0].mxu0
        %v1727 = vadd.f32 %v1502, %v1726
        %v1728 = vpop.f32.mrb[0].mxu0
        %1729 = vmatprep.mubr.f32.mxu0 0.0
        %1730 = vmatmul.mubr.f32.gmra.mrb[0].mxu0 %v1183
        %v1731 = vpop.f32.mrb[0].mxu0
        %v1732 = vadd.f32 %v1507, %v1731
        %v1733 = vpop.f32.mrb[0].mxu0
        %1734 = vdwg.mxu0
        %v1735 = vld [vmem:[#allocation2 + $0x20] sm:$0xff]
        %v1736 = vld [vmem:[#allocation2 + $0x28] sm:$0xff]
        %v1737 = vld [vmem:[#allocation2 + $0x30] sm:$0xff]
        %v1738 = vld [vmem:[#allocation2 + $0x38] sm:$0xff]
        %v1739 = vld [vmem:[#allocation2 + $0x40] sm:$0xff]
        %v1740 = vld [vmem:[#allocation2 + $0x48] sm:$0xff]
        %v1741 = vld [vmem:[#allocation2 + $0x50] sm:$0xff]
        %v1742 = vld [vmem:[#allocation2 + $0x58] sm:$0xff]
        %v1743 = vld [vmem:[#allocation2 + $0x60] sm:$0xff]
        %v1744 = vld [vmem:[#allocation2 + $0x68] sm:$0xff]
        %v1745 = vld [vmem:[#allocation2 + $0x70] sm:$0xff]
        %v1746 = vld [vmem:[#allocation2 + $0x78] sm:$0xff]
        %v1747 = vld [vmem:[#allocation2 + $0x80] sm:$0xff]
        %v1748 = vld [vmem:[#allocation2 + $0x88] sm:$0xff]
        %v1749 = vld [vmem:[#allocation2 + $0x90] sm:$0xff]
        %v1750 = vld [vmem:[#allocation2 + $0x98] sm:$0xff]
        %v1751 = vld [vmem:[#allocation2 + $0xa0] sm:$0xff]
        %v1752 = vld [vmem:[#allocation2 + $0xa8] sm:$0xff]
        %v1753 = vld [vmem:[#allocation2 + $0xb0] sm:$0xff]
        %v1754 = vld [vmem:[#allocation2 + $0xb8] sm:$0xff]
        %v1755 = vld [vmem:[#allocation2 + $0xc0] sm:$0xff]
        %v1756 = vld [vmem:[#allocation2 + $0xc8] sm:$0xff]
        %v1757 = vld [vmem:[#allocation2 + $0xd0] sm:$0xff]
        %v1758 = vld [vmem:[#allocation2 + $0xd8] sm:$0xff]
        %v1759 = vld [vmem:[#allocation2 + $0xe0] sm:$0xff]
        %v1760 = vld [vmem:[#allocation2 + $0xe8] sm:$0xff]
        %v1761 = vld [vmem:[#allocation2 + $0xf0] sm:$0xff]
        %v1762 = vld [vmem:[#allocation2 + $0xf8] sm:$0xff]
        %v1763 = vld [vmem:[#allocation2 + $0x100] sm:$0xff]
        %v1764 = vld [vmem:[#allocation2 + $0x108] sm:$0xff]
        %v1765 = vld [vmem:[#allocation2 + $0x110] sm:$0xff]
        %v1766 = vld [vmem:[#allocation2 + $0x118] sm:$0xff]
        %s1767 = scalar_lea.vmem %s2, 256
        %v1768 = vld [vmem:[%s1767] sm:$0xff]
        %v1769 = vld [vmem:[%s1767 + $0x8] sm:$0xff]
        %v1770 = vld [vmem:[%s1767 + $0x10] sm:$0xff]
        %v1771 = vld [vmem:[%s1767 + $0x18] sm:$0xff]
        %v1772 = vld [vmem:[%s1767 + $0x20] sm:$0xff]
        %v1773 = vld [vmem:[%s1767 + $0x28] sm:$0xff]
        %v1774 = vld [vmem:[%s1767 + $0x30] sm:$0xff]
        %v1775 = vld [vmem:[%s1767 + $0x38] sm:$0xff]
        %v1776 = vld [vmem:[%s1767 + $0x40] sm:$0xff]
        %v1777 = vld [vmem:[%s1767 + $0x48] sm:$0xff]
        %v1778 = vld [vmem:[%s1767 + $0x50] sm:$0xff]
        %v1779 = vld [vmem:[%s1767 + $0x58] sm:$0xff]
        %v1780 = vld [vmem:[%s1767 + $0x60] sm:$0xff]
        %v1781 = vld [vmem:[%s1767 + $0x68] sm:$0xff]
        %v1782 = vld [vmem:[%s1767 + $0x70] sm:$0xff]
        %v1783 = vld [vmem:[%s1767 + $0x78] sm:$0xff]
        %1784 = vmatprep.subr.mxu0 0.0
        %1785 = vmatpush1.msra.mxu0 %v1768
        %1786 = vmatprep.subr.mxu0 0.0
        %1787 = vmatpush1.msra.mxu0 %v1769
        %1788 = vmatprep.subr.mxu0 0.0
        %1789 = vmatpush1.msra.mxu0 %v1770
        %1790 = vmatprep.subr.mxu0 0.0
        %1791 = vmatpush1.msra.mxu0 %v1771
        %1792 = vmatprep.subr.mxu0 0.0
        %1793 = vmatpush1.msra.mxu0 %v1772
        %1794 = vmatprep.subr.mxu0 0.0
        %1795 = vmatpush1.msra.mxu0 %v1773
        %1796 = vmatprep.subr.mxu0 0.0
        %1797 = vmatpush1.msra.mxu0 %v1774
        %1798 = vmatprep.subr.mxu0 0.0
        %1799 = vmatpush1.msra.mxu0 %v1775
        %1800 = vmatprep.subr.mxu0 0.0
        %1801 = vmatpush1.msra.mxu0 %v1776
        %1802 = vmatprep.subr.mxu0 0.0
        %1803 = vmatpush1.msra.mxu0 %v1777
        %1804 = vmatprep.subr.mxu0 0.0
        %1805 = vmatpush1.msra.mxu0 %v1778
        %1806 = vmatprep.subr.mxu0 0.0
        %1807 = vmatpush1.msra.mxu0 %v1779
        %1808 = vmatprep.subr.mxu0 0.0
        %1809 = vmatpush1.msra.mxu0 %v1780
        %1810 = vmatprep.subr.mxu0 0.0
        %1811 = vmatpush1.msra.mxu0 %v1781
        %1812 = vmatprep.subr.mxu0 0.0
        %1813 = vmatpush1.msra.mxu0 %v1782
        %1814 = vmatprep.subr.mxu0 0.0
        %1815 = vmatpush1.msra.mxu0 %v1783
        %1816 = vmatprep.subr.mxu0 0.0
        %1817 = vmatpush1.msra.mxu0 0.0
        %1818 = vmatprep.subr.mxu0 0.0
        %1819 = vmatpush1.msra.mxu0 0.0
        %1820 = vmatprep.subr.mxu0 0.0
        %1821 = vmatpush1.msra.mxu0 0.0
        %1822 = vmatprep.subr.mxu0 0.0
        %1823 = vmatpush1.msra.mxu0 0.0
        %1824 = vmatprep.subr.mxu0 0.0
        %1825 = vmatpush1.msra.mxu0 0.0
        %1826 = vmatprep.subr.mxu0 0.0
        %1827 = vmatpush1.msra.mxu0 0.0
        %1828 = vmatprep.subr.mxu0 0.0
        %1829 = vmatpush1.msra.mxu0 0.0
        %1830 = vmatprep.subr.mxu0 0.0
        %1831 = vmatpush1.msra.mxu0 0.0
        %1832 = vmatprep.subr.mxu0 0.0
        %1833 = vmatpush1.msra.mxu0 0.0
        %1834 = vmatprep.subr.mxu0 0.0
        %1835 = vmatpush1.msra.mxu0 0.0
        %1836 = vmatprep.subr.mxu0 0.0
        %1837 = vmatpush1.msra.mxu0 0.0
        %1838 = vmatprep.subr.mxu0 0.0
        %1839 = vmatpush1.msra.mxu0 0.0
        %1840 = vmatprep.subr.mxu0 0.0
        %1841 = vmatpush1.msra.mxu0 0.0
        %1842 = vmatprep.subr.mxu0 0.0
        %1843 = vmatpush1.msra.mxu0 0.0
        %1844 = vmatprep.subr.mxu0 0.0
        %1845 = vmatpush1.msra.mxu0 0.0
        %1846 = vmatprep.subr.mxu0 0.0
        %1847 = vmatpush1.msra.mxu0 0.0
        %1848 = vmatprep.mubr.f32.mxu0 0.0
        %1849 = vmatmul.mubr.f32.gmra.mrb[0].mxu0 %v1735
        %v1850 = vpop.f32.mrb[0].mxu0
        %v1851 = vadd.f32 0.0, %v1850
        %v1852 = vpop.f32.mrb[0].mxu0
        %1853 = vmatprep.mubr.f32.mxu0 0.0
        %1854 = vmatmul.mubr.f32.gmra.mrb[0].mxu0 %v1736
        %v1855 = vpop.f32.mrb[0].mxu0
        %v1856 = vadd.f32 0.0, %v1855
        %v1857 = vpop.f32.mrb[0].mxu0
        %1858 = vmatprep.mubr.f32.mxu0 0.0
        %1859 = vmatmul.mubr.f32.gmra.mrb[0].mxu0 %v1737
        %v1860 = vpop.f32.mrb[0].mxu0
        %v1861 = vadd.f32 0.0, %v1860
        %v1862 = vpop.f32.mrb[0].mxu0
        %1863 = vmatprep.mubr.f32.mxu0 0.0
        %1864 = vmatmul.mubr.f32.gmra.mrb[0].mxu0 %v1738
        %v1865 = vpop.f32.mrb[0].mxu0
        %v1866 = vadd.f32 0.0, %v1865
        %v1867 = vpop.f32.mrb[0].mxu0
        %1868 = vmatprep.mubr.f32.mxu0 0.0
        %1869 = vmatmul.mubr.f32.gmra.mrb[0].mxu0 %v1739
        %v1870 = vpop.f32.mrb[0].mxu0
        %v1871 = vadd.f32 0.0, %v1870
        %v1872 = vpop.f32.mrb[0].mxu0
        %1873 = vmatprep.mubr.f32.mxu0 0.0
        %1874 = vmatmul.mubr.f32.gmra.mrb[0].mxu0 %v1740
        %v1875 = vpop.f32.mrb[0].mxu0
        %v1876 = vadd.f32 0.0, %v1875
        %v1877 = vpop.f32.mrb[0].mxu0
        %1878 = vmatprep.mubr.f32.mxu0 0.0
        %1879 = vmatmul.mubr.f32.gmra.mrb[0].mxu0 %v1741
        %v1880 = vpop.f32.mrb[0].mxu0
        %v1881 = vadd.f32 0.0, %v1880
        %v1882 = vpop.f32.mrb[0].mxu0
        %1883 = vmatprep.mubr.f32.mxu0 0.0
        %1884 = vmatmul.mubr.f32.gmra.mrb[0].mxu0 %v1742
        %v1885 = vpop.f32.mrb[0].mxu0
        %v1886 = vadd.f32 0.0, %v1885
        %v1887 = vpop.f32.mrb[0].mxu0
        %1888 = vmatprep.mubr.f32.mxu0 0.0
        %1889 = vmatmul.mubr.f32.gmra.mrb[0].mxu0 %v1743
        %v1890 = vpop.f32.mrb[0].mxu0
        %v1891 = vadd.f32 0.0, %v1890
        %v1892 = vpop.f32.mrb[0].mxu0
        %1893 = vmatprep.mubr.f32.mxu0 0.0
        %1894 = vmatmul.mubr.f32.gmra.mrb[0].mxu0 %v1744
        %v1895 = vpop.f32.mrb[0].mxu0
        %v1896 = vadd.f32 0.0, %v1895
        %v1897 = vpop.f32.mrb[0].mxu0
        %1898 = vmatprep.mubr.f32.mxu0 0.0
        %1899 = vmatmul.mubr.f32.gmra.mrb[0].mxu0 %v1745
        %v1900 = vpop.f32.mrb[0].mxu0
        %v1901 = vadd.f32 0.0, %v1900
        %v1902 = vpop.f32.mrb[0].mxu0
        %1903 = vmatprep.mubr.f32.mxu0 0.0
        %1904 = vmatmul.mubr.f32.gmra.mrb[0].mxu0 %v1746
        %v1905 = vpop.f32.mrb[0].mxu0
        %v1906 = vadd.f32 0.0, %v1905
        %v1907 = vpop.f32.mrb[0].mxu0
        %1908 = vmatprep.mubr.f32.mxu0 0.0
        %1909 = vmatmul.mubr.f32.gmra.mrb[0].mxu0 %v1747
        %v1910 = vpop.f32.mrb[0].mxu0
        %v1911 = vadd.f32 0.0, %v1910
        %v1912 = vpop.f32.mrb[0].mxu0
        %1913 = vmatprep.mubr.f32.mxu0 0.0
        %1914 = vmatmul.mubr.f32.gmra.mrb[0].mxu0 %v1748
        %v1915 = vpop.f32.mrb[0].mxu0
        %v1916 = vadd.f32 0.0, %v1915
        %v1917 = vpop.f32.mrb[0].mxu0
        %1918 = vmatprep.mubr.f32.mxu0 0.0
        %1919 = vmatmul.mubr.f32.gmra.mrb[0].mxu0 %v1749
        %v1920 = vpop.f32.mrb[0].mxu0
        %v1921 = vadd.f32 0.0, %v1920
        %v1922 = vpop.f32.mrb[0].mxu0
        %1923 = vmatprep.mubr.f32.mxu0 0.0
        %1924 = vmatmul.mubr.f32.gmra.mrb[0].mxu0 %v1750
        %v1925 = vpop.f32.mrb[0].mxu0
        %v1926 = vadd.f32 0.0, %v1925
        %v1927 = vpop.f32.mrb[0].mxu0
        %1928 = vmatprep.mubr.f32.mxu0 0.0
        %1929 = vmatmul.mubr.f32.gmra.mrb[0].mxu0 %v1751
        %v1930 = vpop.f32.mrb[0].mxu0
        %v1931 = vadd.f32 0.0, %v1930
        %v1932 = vpop.f32.mrb[0].mxu0
        %1933 = vmatprep.mubr.f32.mxu0 0.0
        %1934 = vmatmul.mubr.f32.gmra.mrb[0].mxu0 %v1752
        %v1935 = vpop.f32.mrb[0].mxu0
        %v1936 = vadd.f32 0.0, %v1935
        %v1937 = vpop.f32.mrb[0].mxu0
        %1938 = vmatprep.mubr.f32.mxu0 0.0
        %1939 = vmatmul.mubr.f32.gmra.mrb[0].mxu0 %v1753
        %v1940 = vpop.f32.mrb[0].mxu0
        %v1941 = vadd.f32 0.0, %v1940
        %v1942 = vpop.f32.mrb[0].mxu0
        %1943 = vmatprep.mubr.f32.mxu0 0.0
        %1944 = vmatmul.mubr.f32.gmra.mrb[0].mxu0 %v1754
        %v1945 = vpop.f32.mrb[0].mxu0
        %v1946 = vadd.f32 0.0, %v1945
        %v1947 = vpop.f32.mrb[0].mxu0
        %1948 = vmatprep.mubr.f32.mxu0 0.0
        %1949 = vmatmul.mubr.f32.gmra.mrb[0].mxu0 %v1755
        %v1950 = vpop.f32.mrb[0].mxu0
        %v1951 = vadd.f32 0.0, %v1950
        %v1952 = vpop.f32.mrb[0].mxu0
        %1953 = vmatprep.mubr.f32.mxu0 0.0
        %1954 = vmatmul.mubr.f32.gmra.mrb[0].mxu0 %v1756
        %v1955 = vpop.f32.mrb[0].mxu0
        %v1956 = vadd.f32 0.0, %v1955
        %v1957 = vpop.f32.mrb[0].mxu0
        %1958 = vmatprep.mubr.f32.mxu0 0.0
        %1959 = vmatmul.mubr.f32.gmra.mrb[0].mxu0 %v1757
        %v1960 = vpop.f32.mrb[0].mxu0
        %v1961 = vadd.f32 0.0, %v1960
        %v1962 = vpop.f32.mrb[0].mxu0
        %1963 = vmatprep.mubr.f32.mxu0 0.0
        %1964 = vmatmul.mubr.f32.gmra.mrb[0].mxu0 %v1758
        %v1965 = vpop.f32.mrb[0].mxu0
        %v1966 = vadd.f32 0.0, %v1965
        %v1967 = vpop.f32.mrb[0].mxu0
        %1968 = vmatprep.mubr.f32.mxu0 0.0
        %1969 = vmatmul.mubr.f32.gmra.mrb[0].mxu0 %v1759
        %v1970 = vpop.f32.mrb[0].mxu0
        %v1971 = vadd.f32 0.0, %v1970
        %v1972 = vpop.f32.mrb[0].mxu0
        %1973 = vmatprep.mubr.f32.mxu0 0.0
        %1974 = vmatmul.mubr.f32.gmra.mrb[0].mxu0 %v1760
        %v1975 = vpop.f32.mrb[0].mxu0
        %v1976 = vadd.f32 0.0, %v1975
        %v1977 = vpop.f32.mrb[0].mxu0
        %1978 = vmatprep.mubr.f32.mxu0 0.0
        %1979 = vmatmul.mubr.f32.gmra.mrb[0].mxu0 %v1761
        %v1980 = vpop.f32.mrb[0].mxu0
        %v1981 = vadd.f32 0.0, %v1980
        %v1982 = vpop.f32.mrb[0].mxu0
        %1983 = vmatprep.mubr.f32.mxu0 0.0
        %1984 = vmatmul.mubr.f32.gmra.mrb[0].mxu0 %v1762
        %v1985 = vpop.f32.mrb[0].mxu0
        %v1986 = vadd.f32 0.0, %v1985
        %v1987 = vpop.f32.mrb[0].mxu0
        %1988 = vmatprep.mubr.f32.mxu0 0.0
        %1989 = vmatmul.mubr.f32.gmra.mrb[0].mxu0 %v1763
        %v1990 = vpop.f32.mrb[0].mxu0
        %v1991 = vadd.f32 0.0, %v1990
        %v1992 = vpop.f32.mrb[0].mxu0
        %1993 = vmatprep.mubr.f32.mxu0 0.0
        %1994 = vmatmul.mubr.f32.gmra.mrb[0].mxu0 %v1764
        %v1995 = vpop.f32.mrb[0].mxu0
        %v1996 = vadd.f32 0.0, %v1995
        %v1997 = vpop.f32.mrb[0].mxu0
        %1998 = vmatprep.mubr.f32.mxu0 0.0
        %1999 = vmatmul.mubr.f32.gmra.mrb[0].mxu0 %v1765
        %v2000 = vpop.f32.mrb[0].mxu0
        %v2001 = vadd.f32 0.0, %v2000
        %v2002 = vpop.f32.mrb[0].mxu0
        %2003 = vmatprep.mubr.f32.mxu0 0.0
        %2004 = vmatmul.mubr.f32.gmra.mrb[0].mxu0 %v1766
        %v2005 = vpop.f32.mrb[0].mxu0
        %v2006 = vadd.f32 0.0, %v2005
        %v2007 = vpop.f32.mrb[0].mxu0
        %2008 = vdwg.mxu0
        %v2009 = vadd.f32 %v1577, %v1851
        %v2010 = vadd.f32 %v1582, %v1856
        %v2011 = vadd.f32 %v1587, %v1861
        %v2012 = vadd.f32 %v1592, %v1866
        %v2013 = vadd.f32 %v1597, %v1871
        %v2014 = vadd.f32 %v1602, %v1876
        %v2015 = vadd.f32 %v1607, %v1881
        %v2016 = vadd.f32 %v1612, %v1886
        %v2017 = vadd.f32 %v1617, %v1891
        %v2018 = vadd.f32 %v1622, %v1896
        %v2019 = vadd.f32 %v1627, %v1901
        %v2020 = vadd.f32 %v1632, %v1906
        %v2021 = vadd.f32 %v1637, %v1911
        %v2022 = vadd.f32 %v1642, %v1916
        %v2023 = vadd.f32 %v1647, %v1921
        %v2024 = vadd.f32 %v1652, %v1926
        %v2025 = vadd.f32 %v1657, %v1931
        %v2026 = vadd.f32 %v1662, %v1936
        %v2027 = vadd.f32 %v1667, %v1941
        %v2028 = vadd.f32 %v1672, %v1946
        %v2029 = vadd.f32 %v1677, %v1951
        %v2030 = vadd.f32 %v1682, %v1956
        %v2031 = vadd.f32 %v1687, %v1961
        %v2032 = vadd.f32 %v1692, %v1966
        %v2033 = vadd.f32 %v1697, %v1971
        %v2034 = vadd.f32 %v1702, %v1976
        %v2035 = vadd.f32 %v1707, %v1981
        %v2036 = vadd.f32 %v1712, %v1986
        %v2037 = vadd.f32 %v1717, %v1991
        %v2038 = vadd.f32 %v1722, %v1996
        %v2039 = vadd.f32 %v1727, %v2001
        %v2040 = vadd.f32 %v1732, %v2006
        %v2041 = vld [vmem:[%s3] sm:$0x1]
        %v2043 = vlaneseq
        %v2044 = vshrl.u32 %v2043, 7
        %v2045 = vsub.s32 0, %v2044
        %v2046 = vrot.slane %v2041, %v2045
        %v2048 = vadd.f32 %v2009, %v2046
        %v2049 = vadd.f32 %v2010, %v2046
        %v2050 = vadd.f32 %v2011, %v2046
        %v2051 = vadd.f32 %v2012, %v2046
        %v2052 = vadd.f32 %v2013, %v2046
        %v2053 = vadd.f32 %v2014, %v2046
        %v2054 = vadd.f32 %v2015, %v2046
        %v2055 = vadd.f32 %v2016, %v2046
        %v2056 = vadd.f32 %v2017, %v2046
        %v2057 = vadd.f32 %v2018, %v2046
        %v2058 = vadd.f32 %v2019, %v2046
        %v2059 = vadd.f32 %v2020, %v2046
        %v2060 = vadd.f32 %v2021, %v2046
        %v2061 = vadd.f32 %v2022, %v2046
        %v2062 = vadd.f32 %v2023, %v2046
        %v2063 = vadd.f32 %v2024, %v2046
        %v2064 = vadd.f32 %v2025, %v2046
        %v2065 = vadd.f32 %v2026, %v2046
        %v2066 = vadd.f32 %v2027, %v2046
        %v2067 = vadd.f32 %v2028, %v2046
        %v2068 = vadd.f32 %v2029, %v2046
        %v2069 = vadd.f32 %v2030, %v2046
        %v2070 = vadd.f32 %v2031, %v2046
        %v2071 = vadd.f32 %v2032, %v2046
        %v2072 = vadd.f32 %v2033, %v2046
        %v2073 = vadd.f32 %v2034, %v2046
        %v2074 = vadd.f32 %v2035, %v2046
        %v2075 = vadd.f32 %v2036, %v2046
        %v2076 = vadd.f32 %v2037, %v2046
        %v2077 = vadd.f32 %v2038, %v2046
        %v2078 = vadd.f32 %v2039, %v2046
        %v2079 = vadd.f32 %v2040, %v2046
        %2080 = vst [vmem:[%s271] sm:$0xff] %v2048
        %2081 = vst [vmem:[%s271 + $0x8] sm:$0xff] %v2049
        %2082 = vst [vmem:[%s271 + $0x10] sm:$0xff] %v2050
        %2083 = vst [vmem:[%s271 + $0x18] sm:$0xff] %v2051
        %2084 = vst [vmem:[%s271 + $0x20] sm:$0xff] %v2052
        %2085 = vst [vmem:[%s271 + $0x28] sm:$0xff] %v2053
        %2086 = vst [vmem:[%s271 + $0x30] sm:$0xff] %v2054
        %2087 = vst [vmem:[%s271 + $0x38] sm:$0xff] %v2055
        %2088 = vst [vmem:[%s271 + $0x40] sm:$0xff] %v2056
        %2089 = vst [vmem:[%s271 + $0x48] sm:$0xff] %v2057
        %2090 = vst [vmem:[%s271 + $0x50] sm:$0xff] %v2058
        %2091 = vst [vmem:[%s271 + $0x58] sm:$0xff] %v2059
        %2092 = vst [vmem:[%s271 + $0x60] sm:$0xff] %v2060
        %2093 = vst [vmem:[%s271 + $0x68] sm:$0xff] %v2061
        %2094 = vst [vmem:[%s271 + $0x70] sm:$0xff] %v2062
        %2095 = vst [vmem:[%s271 + $0x78] sm:$0xff] %v2063
        %2096 = vst [vmem:[%s271 + $0x80] sm:$0xff] %v2064
        %2097 = vst [vmem:[%s271 + $0x88] sm:$0xff] %v2065
        %2098 = vst [vmem:[%s271 + $0x90] sm:$0xff] %v2066
        %2099 = vst [vmem:[%s271 + $0x98] sm:$0xff] %v2067
        %2100 = vst [vmem:[%s271 + $0xa0] sm:$0xff] %v2068
        %2101 = vst [vmem:[%s271 + $0xa8] sm:$0xff] %v2069
        %2102 = vst [vmem:[%s271 + $0xb0] sm:$0xff] %v2070
        %2103 = vst [vmem:[%s271 + $0xb8] sm:$0xff] %v2071
        %2104 = vst [vmem:[%s271 + $0xc0] sm:$0xff] %v2072
        %2105 = vst [vmem:[%s271 + $0xc8] sm:$0xff] %v2073
        %2106 = vst [vmem:[%s271 + $0xd0] sm:$0xff] %v2074
        %2107 = vst [vmem:[%s271 + $0xd8] sm:$0xff] %v2075
        %2108 = vst [vmem:[%s271 + $0xe0] sm:$0xff] %v2076
        %2109 = vst [vmem:[%s271 + $0xe8] sm:$0xff] %v2077
        %2110 = vst [vmem:[%s271 + $0xf0] sm:$0xff] %v2078
        %2111 = vst [vmem:[%s271 + $0xf8] sm:$0xff] %v2079
        %s2112 = sand.u32 %s181, 1
        %s2113 = scalar_lea.sflag [#allocation4], %s2112
        %s2114 = sand.u32 %s181, 1
        %s2115 = smul.addr %s2114, 256
        %s2116 = scalar_lea.vmem [#allocation3], %s2115
        // Predicated region
        $region49: #{tpu_custom_call.1} parent=47 // pred_check
          %p2117 = pneg %p191
        $region50: #{tpu_custom_call.1} parent=47 // pred_check_branch
          %2119 = sbr.rel (%p2117) target = $region52
        $region51: #{tpu_custom_call.1} parent=47 // pred_region
          %s2121 = ssub.s32 4096, 4096
          %2122 = vsyncadd %s2113, %s2121
          %s2123 = smul.addr %s21, 32
          %s2124 = smul.addr %s2123, 128
          %s2125 = scalar_lea.hbm %s7, %s2124
          %s2126 = sshll.u32 %s2116, 4
          %s2127 = int_to_ptr.vmem [resolvable:$true] %s2126
          %2132 = dma.vmem_to_hbm [thread:$0]  %s2127, 4096, %s2125, %s2113, 128, 128, 8
        $region52: #{tpu_custom_call.1} parent=47 // pred_fallthru
          _
      $region48: #{tpu_custom_call.1} parent=5 // pred_fallthru
        _
      %p2133 = scmp.le.s32.totalorder 2, %s16
      // Predicated region
      $region53: #{tpu_custom_call.1} parent=5 // pred_check
        %p2134 = pneg %p2133
      $region54: #{tpu_custom_call.1} parent=5 // pred_check_branch
        %2136 = sbr.rel (%p2134) target = $region56
      $region55: #{tpu_custom_call.1} parent=5 // pred_region
        %s2137 = ssub.s32 %s16, 2
        // Predicated region
        $region57: #{tpu_custom_call.1} parent=55 // pred_check
          %p2138 = pneg %p197
        $region58: #{tpu_custom_call.1} parent=55 // pred_check_branch
          %2140 = sbr.rel (%p2138) target = $region60
        $region59: #{tpu_custom_call.1} parent=55 // pred_region
          %s2141 = sand.u32 %s182, 1
          %s2142 = scalar_lea.sflag [#allocation4], %s2141
          %s2143 = sand.u32 %s182, 1
          %s2144 = smul.addr %s2143, 256
          %s2145 = scalar_lea.vmem [#allocation3], %s2144
          %2146 = dma.done %s2142, 4096
        $region60: #{tpu_custom_call.1} parent=55 // pred_fallthru
          _
      $region56: #{tpu_custom_call.1} parent=5 // pred_fallthru
        _
    $region6: #{tpu_custom_call.1} parent=1 // loop_footer
      %s20 = sadd.s32 1, %s16
    $region7: #{tpu_custom_call.1} parent=1 // loop_footer_branch
      %15 = sbr.rel target = $region3
    $region8: #{tpu_custom_call.1} parent=1 // loop_exit
      _
    %2147 = vsyncpa [#allocation4], 1
    %s2148 = scalar_lea.sflag [#allocation4], 1
    %2149 = vsyncpa %s2148, 1

</llo_original>
